<compile_context>
chip_gen: v6e
topology: v6e:2x2x1
jax: 0.10.0
libtpu: 0.0.40
codegen_flags: <defaults>
</compile_context>

<pallas_src>
import functools
import math

import jax
import jax.numpy as jnp
from jax.experimental import pallas as pl
from jax.experimental.pallas import tpu as pltpu


def _round_up(x, m):
    return (x + m - 1) // m * m


def _device_kind():
    try:
        return jax.devices()[0].device_kind.lower()
    except Exception:
        return ""


def _use_bf16_elu_exp():
    # v6e/v7x EUP supports bf16 (~2x f32 throughput); v5e/v4 do not.
    k = _device_kind()
    return ("v6" in k) or ("v7" in k)


def _chip_vmem_config():
    """(block budget bytes, vmem_limit_bytes) per chip generation."""
    k = _device_kind()
    if "v7" in k:                        # 64 MiB physical VMEM per TensorCore
        return 16 << 20, 40 << 20
    return 24 << 20, 64 << 20            # v5e / v6e: 128 MiB physical VMEM


@functools.lru_cache(maxsize=None)
def _probe_roll_sign():
    """pltpu.roll sign convention vs jnp.roll: +1 same, -1 opposite, 0 unusable."""
    def k(x_ref, o_ref):
        o_ref[...] = pltpu.roll(x_ref[...], shift=1, axis=0)

    try:
        x = jnp.arange(8 * 128, dtype=jnp.float32).reshape(8, 128)
        y = pl.pallas_call(
            k, out_shape=jax.ShapeDtypeStruct((8, 128), jnp.float32))(x)
        if bool(jnp.array_equal(y, jnp.roll(x, 1, axis=0))):
            return 1
        if bool(jnp.array_equal(y, jnp.roll(x, -1, axis=0))):
            return -1
    except Exception:
        pass
    return 0   # fall back to jnp.roll (slice+concat) inside the kernel


def _elu(x, bf16_exp):
    # nn.ELU(alpha=1.0). min() keeps exp finite for positives (branch discarded).
    neg = jnp.minimum(x, 0.0)
    if bf16_exp:
        e = jnp.exp(neg.astype(jnp.bfloat16)).astype(jnp.float32)
    else:
        e = jnp.exp(neg)
    return jnp.where(x > 0, x, e - 1.0)


# ------------------------------ kernel --------------------------------------
def dsconv_kernel(x_ref, lidx_ref, dw_ref, s1_ref, b1_ref, w_ref, s2_ref,
                  b2_ref, *rest, K, pad, L, cout, cout_pad, downsample,
                  bf16_exp, roll_sign):
    """One (Rb, C) row block (= nb whole batch elements, NLC flattened,
    channels on lanes) per grid step.

    x_ref:    (Rb, C)   activation rows (f32)
    lidx_ref: (Rb, 1)   int32 row-within-sequence index (row % L)
    dw_ref:   (K, C)    depthwise taps
    w_ref:    downsample: (2C, cout_pad + cout) block-diagonal bf16 weight
              identity:   (C, cout) bf16 pointwise weight
    s*/b*:    (1, C)/(1, cout) folded BatchNorm scale / shift (f32)
    out_ref:  (Rb, cout)
    """
    if downsample:
        sd_ref, bd_ref, out_ref = rest
    else:
        (out_ref,) = rest

    Rb = x_ref.shape[0]
    x = x_ref[...].astype(jnp.float32)                      # (Rb, C)
    l = lidx_ref[...]                                       # (Rb, 1) int32

    # ---- depthwise conv: out[l] = sum_k dw[k] * x[l + k - pad] -------------
    # Shifted taps via XLU rolls + per-row boundary masks: no halo scratch,
    # no full-tile zero store, no unaligned sublane slices.
    dw = dw_ref[...].astype(jnp.float32)                    # (K, C), loaded once
    acc = jnp.zeros_like(x)
    for k in range(K):                                      # K is small & static
        s = pad - k                                         # tap reads x[row - s]
        tap_w = dw[k:k + 1, :]                              # (1, C)
        if s == 0:
            acc = acc + x * tap_w
            continue
        if roll_sign == 0:
            shifted = jnp.roll(x, s, axis=0)                # safe fallback
        else:
            shifted = pltpu.roll(x, shift=(roll_sign * s) % Rb, axis=0)
        valid = (l >= s) if s > 0 else (l < L + s)          # zero-padding mask
        acc = acc + jnp.where(valid, shifted * tap_w, 0.0)

    # ---- bn_1 + ELU (f32) ---------------------------------------------------
    h = _elu(acc * s1_ref[...] + b1_ref[...], bf16_exp)

    if downsample:
        # Pointwise conv and 1x1 downsample conv in ONE MXU call with a
        # block-diagonal RHS; splits land on 128-aligned lane offsets.
        lhs = jnp.concatenate([h, x], axis=-1).astype(jnp.bfloat16)   # (Rb, 2C)
        y = jnp.dot(lhs, w_ref[...], preferred_element_type=jnp.float32)
        h2 = y[:, :cout]                                    # pointwise result
        res = y[:, cout_pad:cout_pad + cout]                # downsample residual
        out = _elu(_elu(h2 * s2_ref[...] + b2_ref[...], bf16_exp)
                   + res * sd_ref[...] + bd_ref[...], bf16_exp)
    else:
        # Identity residual: no matmul, added in f32 (matches PyTorch exactly).
        y = jnp.dot(h.astype(jnp.bfloat16), w_ref[...],
                    preferred_element_type=jnp.float32)     # (Rb, cout)
        h2 = _elu(y * s2_ref[...] + b2_ref[...], bf16_exp)
        out = _elu(h2 + x, bf16_exp)

    out_ref[...] = out.astype(out_ref.dtype)


# ------------------------------ wrapper --------------------------------------
def _pick_batch_block(N, L, C, cout, mm_cols, budget_bytes):
    """Batch elements per grid step, sized against VMEM *including* in-kernel
    temporaries, with >= 2 grid steps when possible (pipelining + v7x's 2 TCs)."""
    per_n = 4 * L * (2 * C            # double-buffered input block
                     + 2 * cout       # double-buffered output block
                     + 2              # lidx block
                     + 5 * C          # x, acc, rolled tap, mask temps (f32)
                     + 3 * mm_cols)   # matmul result + BN/ELU temps (f32)
    per_n += 2 * 2 * C * L            # bf16 matmul LHS
    nb = max(1, min(N, budget_bytes // max(per_n, 1)))
    if N >= 2:
        nb = min(nb, max(1, N // 2))
    align = 8 // math.gcd(L, 8)       # keep the block's sublane dim % 8 == 0
    nb = max(align, (nb // align) * align)
    return int(nb)


def dsconv_forward(x_ncl, params, *, kernel_size, padding, out_channels,
                   downsample, stride=1):
    """x_ncl: (N, C, L) float32 (PyTorch layout). Returns (N, Cout, L)."""
    # TODO(synk): stride > 1 and training-mode BatchNorm are not supported.
    assert stride == 1
    N, C, L = x_ncl.shape
    K, pad = kernel_size, padding
    Cout = out_channels
    assert L + 2 * pad - K + 1 == L, \
        "DSConv residual add needs padding == (kernel_size - 1) // 2"
    if not downsample:
        assert C == Cout, "identity residual needs f_3x3 == f_1x1"

    w = params["w"]
    cout_pad = (w.shape[1] - Cout) if downsample else Cout

    bf16_exp = _use_bf16_elu_exp()
    roll_sign = _probe_roll_sign()
    block_budget, vmem_limit = _chip_vmem_config()
    nb = _pick_batch_block(N, L, C, Cout, w.shape[1], block_budget)
    steps = -(-N // nb)
    n_pad = steps * nb
    rb = nb * L

    # TODO(synk): when stacking DSConv blocks (IMUNet) keep activations in the
    # flattened (N*L, C) layout between blocks so these boundary transposes /
    # reshapes disappear.
    x_nlc = jnp.transpose(x_ncl, (0, 2, 1))                 # NCL -> NLC
    if n_pad != N:
        x_nlc = jnp.pad(x_nlc, ((0, n_pad - N), (0, 0), (0, 0)))
    x2 = x_nlc.reshape(n_pad * L, C)                        # contiguous collapse
    lidx = jnp.tile(jnp.arange(L, dtype=jnp.int32), n_pad)[:, None]

    kern = functools.partial(
        dsconv_kernel, K=K, pad=pad, L=L, cout=Cout, cout_pad=cout_pad,
        downsample=downsample, bf16_exp=bf16_exp, roll_sign=roll_sign)

    args = [x2, lidx, params["dw"], params["s1"], params["b1"], w,
            params["s2"], params["b2"]]
    if downsample:
        args += [params["sd"], params["bd"]]

    mm_k = 2 * C if downsample else C
    cost = pl.CostEstimate(
        flops=int(n_pad * L * (2 * K * C + 2 * mm_k * w.shape[1] + 12 * Cout)),
        transcendentals=int(n_pad * L * (C + 2 * Cout)),
        bytes_accessed=int(x2.size * 4 + n_pad * L * (Cout * 4 + 4)
                           + w.size * 2 + (K + 2) * C * 4 + 4 * Cout * 4),
    )

    def _call(single_buffer_consts):
        def const_spec(shape):
            if single_buffer_consts:
                # Constant-index blocks: double-buffering only burns VMEM.
                return pl.BlockSpec(shape, lambda n: (0, 0),
                                    pipeline_mode=pl.Buffered(1))
            return pl.BlockSpec(shape, lambda n: (0, 0))

        in_specs = [
            pl.BlockSpec((rb, C), lambda n: (n, 0)),
            pl.BlockSpec((rb, 1), lambda n: (n, 0)),
            const_spec((K, C)),
            const_spec((1, C)),
            const_spec((1, C)),
            const_spec(w.shape),
            const_spec((1, Cout)),
            const_spec((1, Cout)),
        ]
        if downsample:
            in_specs += [const_spec((1, Cout)), const_spec((1, Cout))]

        return pl.pallas_call(
            kern,
            out_shape=jax.ShapeDtypeStruct((n_pad * L, Cout), x_ncl.dtype),
            grid_spec=pltpu.PrefetchScalarGridSpec(
                num_scalar_prefetch=0,
                grid=(steps,),
                in_specs=in_specs,
                out_specs=pl.BlockSpec((rb, Cout), lambda n: (n, 0)),
            ),
            compiler_params=pltpu.CompilerParams(
                dimension_semantics=("parallel",),
                vmem_limit_bytes=vmem_limit),
            cost_estimate=cost,
        )(*args)

    try:
        out2 = _call(True)
    except Exception:
        # pl.Buffered(1) not supported by this jax build / chip: retry plain.
        out2 = _call(False)

    out = out2.reshape(n_pad, L, Cout)[:N]
    return jnp.transpose(out, (0, 2, 1))                    # NLC -> NCL


# --------------------------- parameter setup ---------------------------------
def _fold_bn(kg, kb, km, kv, c):
    eps = 1e-5
    gamma = 1.0 + 0.1 * jax.random.normal(kg, (c,), jnp.float32)
    beta = 0.1 * jax.random.normal(kb, (c,), jnp.float32)
    mean = 0.1 * jax.random.normal(km, (c,), jnp.float32)
    var = jnp.abs(jax.random.normal(kv, (c,), jnp.float32)) + 0.5
    scale = gamma / jnp.sqrt(var + eps)
    shift = beta - mean * scale
    return scale, shift


def init_params(key, f_3x3, f_1x1, kernel_size, downsample):
    ks = jax.random.split(key, 15)
    # PyTorch-layout weights
    dw_w = 0.3 * jax.random.normal(ks[0], (f_3x3, 1, kernel_size), jnp.float32)
    pw_w = 0.3 * jax.random.normal(ks[1], (f_1x1, f_3x3, 1), jnp.float32)
    dn_w = 0.3 * jax.random.normal(ks[2], (f_1x1, f_3x3, 1), jnp.float32)
    s1, b1 = _fold_bn(*ks[3:7], f_3x3)
    s2, b2 = _fold_bn(*ks[7:11], f_1x1)
    sd, bd = _fold_bn(*ks[11:15], f_1x1)

    pw_t = jnp.transpose(pw_w[:, :, 0])                     # (C, Cout)
    if downsample:
        dn_t = jnp.transpose(dn_w[:, :, 0])                 # (C, Cout)
        cout_pad = _round_up(f_1x1, 128)                    # aligned column split
        w = jnp.zeros((2 * f_3x3, cout_pad + f_1x1), jnp.float32)
        w = w.at[:f_3x3, :f_1x1].set(pw_t)                  # pointwise block
        w = w.at[f_3x3:, cout_pad:].set(dn_t)               # downsample block
    else:
        assert f_3x3 == f_1x1, "identity residual needs f_3x3 == f_1x1"
        w = pw_t                                            # (C, Cout), unpadded

    kparams = dict(
        dw=jnp.transpose(dw_w[:, 0, :]),                    # (K, C) f32
        w=w.astype(jnp.bfloat16),                           # bf16 MXU operand
        s1=s1[None, :], b1=b1[None, :],
        s2=s2[None, :], b2=b2[None, :],
    )
    if downsample:
        kparams.update(sd=sd[None, :], bd=bd[None, :])
    raw = dict(dw_w=dw_w, pw_w=pw_w, dn_w=dn_w,
               s1=s1, b1=b1, s2=s2, b2=b2, sd=sd, bd=bd)
    return kparams, raw


# --------------------------- pure-JAX reference -------------------------------
def reference(x_ncl, raw, *, kernel_size, padding, downsample):
    C = x_ncl.shape[1]
    h = jax.lax.conv_general_dilated(
        x_ncl, raw["dw_w"], window_strides=(1,), padding=[(padding, padding)],
        feature_group_count=C, dimension_numbers=("NCH", "OIH", "NCH"))
    h = h * raw["s1"][None, :, None] + raw["b1"][None, :, None]
    h = jax.nn.elu(h)
    h2 = jnp.einsum("ncl,oc->nol", h, raw["pw_w"][:, :, 0])
    h2 = h2 * raw["s2"][None, :, None] + raw["b2"][None, :, None]
    h2 = jax.nn.elu(h2)
    if downsample:
        res = jnp.einsum("ncl,oc->nol", x_ncl, raw["dn_w"][:, :, 0])
        res = res * raw["sd"][None, :, None] + raw["bd"][None, :, None]
    else:
        res = x_ncl
    return jax.nn.elu(h2 + res)


if __name__ == "__main__":
    key = jax.random.PRNGKey(0)
    kx1, kx2, kp1, kp2 = jax.random.split(key, 4)
    K, pad = 3, 1

    # 1) downsample block: f_3x3 = 4 -> f_1x1 = 8, N = 2, L = 16
    N, C, Cout, L = 2, 4, 8, 16
    x = jax.random.normal(kx1, (N, C, L), jnp.float32)      # PyTorch NCL input
    params, raw = init_params(kp1, C, Cout, K, downsample=True)
    out = dsconv_forward(x, params, kernel_size=K, padding=pad,
                         out_channels=Cout, downsample=True)
    out = jax.block_until_ready(out)
    ref = reference(x, raw, kernel_size=K, padding=pad, downsample=True)
    assert out.shape == (N, Cout, L), out.shape
    # bf16 MXU operands (f32 accumulate) -> relaxed tolerance vs f32 reference.
    assert jnp.allclose(out, ref, atol=5e-2, rtol=5e-2), "downsample mismatch"

    # 2) identity-residual block: f_3x3 == f_1x1 == 8
    x_id = jax.random.normal(kx2, (N, Cout, L), jnp.float32)
    params2, raw2 = init_params(kp2, Cout, Cout, K, downsample=False)
    out2 = dsconv_forward(x_id, params2, kernel_size=K, padding=pad,
                          out_channels=Cout, downsample=False)
    out2 = jax.block_until_ready(out2)
    ref2 = reference(x_id, raw2, kernel_size=K, padding=pad, downsample=False)
    assert out2.shape == (N, Cout, L), out2.shape
    assert jnp.allclose(out2, ref2, atol=5e-2, rtol=5e-2), "identity mismatch"

    print("KERNEL_OK")
</pallas_src>

<mosaic_0001>
module attributes {stable_mosaic.version = 11 : i64} {
  func.func @k(%arg0: memref<8x128xf32, #tpu.memory_space<vmem>>, %arg1: memref<8x128xf32, #tpu.memory_space<vmem>>) attributes {dimension_semantics = [], scalar_prefetch = 0 : i64, scratch_operands = 0 : i64, tpu.core_type = #tpu.core_type<tc>} {
    %c0 = arith.constant 0 : index
    %c0_0 = arith.constant 0 : index
    %0 = vector.load %arg0[%c0, %c0_0] : memref<8x128xf32, #tpu.memory_space<vmem>>, vector<8x128xf32>
    %c1_i32 = arith.constant 1 : i32
    %1 = tpu.dynamic_rotate %0 by %c1_i32 dim 0 : vector<8x128xf32>, i32 -> vector<8x128xf32>
    %c0_1 = arith.constant 0 : index
    %c0_2 = arith.constant 0 : index
    %2 = vector.load %arg1[%c0_1, %c0_2] : memref<8x128xf32, #tpu.memory_space<vmem>>, vector<8x128xf32>
    tpu.vector_store %arg1[%c0_1, %c0_2], %1 {strides = array<i32>} : memref<8x128xf32, #tpu.memory_space<vmem>>, vector<8x128xf32>,
    return
  }
}

module attributes {stable_mosaic.version = 11 : i64} {
  func.func @dsconv_kernel(%arg0: i32, %arg1: memref<16x4xf32, #tpu.memory_space<vmem>>, %arg2: memref<16x1xi32, #tpu.memory_space<vmem>>, %arg3: memref<3x4xf32, #tpu.memory_space<vmem>>, %arg4: memref<1x4xf32, #tpu.memory_space<vmem>>, %arg5: memref<1x4xf32, #tpu.memory_space<vmem>>, %arg6: memref<8x136xbf16, #tpu.memory_space<vmem>>, %arg7: memref<1x8xf32, #tpu.memory_space<vmem>>, %arg8: memref<1x8xf32, #tpu.memory_space<vmem>>, %arg9: memref<1x8xf32, #tpu.memory_space<vmem>>, %arg10: memref<1x8xf32, #tpu.memory_space<vmem>>, %arg11: memref<16x8xf32, #tpu.memory_space<vmem>>) attributes {dimension_semantics = [#tpu.dimension_semantics<parallel>], iteration_bounds = array<i64: 2>, scalar_prefetch = 0 : i64, scratch_operands = 0 : i64, tpu.core_type = #tpu.core_type<tc>, window_params = [{transform_indices = @transform_0, window_bounds = array<i64: 16, 4>}, {transform_indices = @transform_1, window_bounds = array<i64: 16, 1>}, {pipeline_mode = #tpu.pipeline_mode<synchronous>, transform_indices = @transform_2, window_bounds = array<i64: 3, 4>}, {pipeline_mode = #tpu.pipeline_mode<synchronous>, transform_indices = @transform_3, window_bounds = array<i64: 1, 4>}, {pipeline_mode = #tpu.pipeline_mode<synchronous>, transform_indices = @transform_4, window_bounds = array<i64: 1, 4>}, {pipeline_mode = #tpu.pipeline_mode<synchronous>, transform_indices = @transform_5, window_bounds = array<i64: 8, 136>}, {pipeline_mode = #tpu.pipeline_mode<synchronous>, transform_indices = @transform_6, window_bounds = array<i64: 1, 8>}, {pipeline_mode = #tpu.pipeline_mode<synchronous>, transform_indices = @transform_7, window_bounds = array<i64: 1, 8>}, {pipeline_mode = #tpu.pipeline_mode<synchronous>, transform_indices = @transform_8, window_bounds = array<i64: 1, 8>}, {pipeline_mode = #tpu.pipeline_mode<synchronous>, transform_indices = @transform_9, window_bounds = array<i64: 1, 8>}, {transform_indices = @transform_10, window_bounds = array<i64: 16, 8>}]} {
    %c0 = arith.constant 0 : index
    %c0_0 = arith.constant 0 : index
    %0 = vector.load %arg1[%c0, %c0_0] : memref<16x4xf32, #tpu.memory_space<vmem>>, vector<16x4xf32>
    %c0_1 = arith.constant 0 : index
    %c0_2 = arith.constant 0 : index
    %1 = vector.load %arg2[%c0_1, %c0_2] : memref<16x1xi32, #tpu.memory_space<vmem>>, vector<16x1xi32>
    %c0_3 = arith.constant 0 : index
    %c0_4 = arith.constant 0 : index
    %2 = vector.load %arg3[%c0_3, %c0_4] : memref<3x4xf32, #tpu.memory_space<vmem>>, vector<3x4xf32>
    %cst = arith.constant 0.000000e+00 : f32
    %3 = vector.broadcast %cst : f32 to vector<16x4xf32>
    %4 = vector.extract_strided_slice %2 {offsets = [0, 0], sizes = [1, 4], strides = [1, 1]} : vector<3x4xf32> to vector<1x4xf32>
    %5 = vector.extract_strided_slice %0 {offsets = [15, 0], sizes = [1, 4], strides = [1, 1]} : vector<16x4xf32> to vector<1x4xf32>
    %6 = vector.extract_strided_slice %0 {offsets = [0, 0], sizes = [15, 4], strides = [1, 1]} : vector<16x4xf32> to vector<15x4xf32>
    %7 = tpu.concatenate %5, %6 in 0 : vector<1x4xf32>, vector<15x4xf32> -> vector<16x4xf32>
    %c1_i32 = arith.constant 1 : i32
    %8 = vector.broadcast %c1_i32 : i32 to vector<16x1xi32>
    %9 = arith.cmpi sge, %1, %8 : vector<16x1xi32>
    %10 = vector.broadcast %4 : vector<1x4xf32> to vector<16x4xf32>
    %11 = arith.mulf %7, %10 : vector<16x4xf32>
    %cst_5 = arith.constant 0.000000e+00 : f32
    %12 = vector.shape_cast %9 : vector<16x1xi1> to vector<16x1xi1>
    %13 = vector.broadcast %12 : vector<16x1xi1> to vector<16x4xi1>
    %14 = vector.broadcast %cst_5 : f32 to vector<16x4xf32>
    %15 = arith.select %13, %11, %14 : vector<16x4xi1>, vector<16x4xf32>
    %16 = arith.addf %3, %15 : vector<16x4xf32>
    %17 = vector.extract_strided_slice %2 {offsets = [1, 0], sizes = [1, 4], strides = [1, 1]} : vector<3x4xf32> to vector<1x4xf32>
    %18 = vector.broadcast %17 : vector<1x4xf32> to vector<16x4xf32>
    %19 = arith.mulf %0, %18 : vector<16x4xf32>
    %20 = arith.addf %16, %19 : vector<16x4xf32>
    %21 = vector.extract_strided_slice %2 {offsets = [2, 0], sizes = [1, 4], strides = [1, 1]} : vector<3x4xf32> to vector<1x4xf32>
    %22 = vector.extract_strided_slice %0 {offsets = [1, 0], sizes = [15, 4], strides = [1, 1]} : vector<16x4xf32> to vector<15x4xf32>
    %23 = vector.extract_strided_slice %0 {offsets = [0, 0], sizes = [1, 4], strides = [1, 1]} : vector<16x4xf32> to vector<1x4xf32>
    %24 = tpu.concatenate %22, %23 in 0 : vector<15x4xf32>, vector<1x4xf32> -> vector<16x4xf32>
    %c15_i32 = arith.constant 15 : i32
    %25 = vector.broadcast %c15_i32 : i32 to vector<16x1xi32>
    %26 = arith.cmpi slt, %1, %25 : vector<16x1xi32>
    %27 = vector.broadcast %21 : vector<1x4xf32> to vector<16x4xf32>
    %28 = arith.mulf %24, %27 : vector<16x4xf32>
    %cst_6 = arith.constant 0.000000e+00 : f32
    %29 = vector.shape_cast %26 : vector<16x1xi1> to vector<16x1xi1>
    %30 = vector.broadcast %29 : vector<16x1xi1> to vector<16x4xi1>
    %31 = vector.broadcast %cst_6 : f32 to vector<16x4xf32>
    %32 = arith.select %30, %28, %31 : vector<16x4xi1>, vector<16x4xf32>
    %33 = arith.addf %20, %32 : vector<16x4xf32>
    %c0_7 = arith.constant 0 : index
    %c0_8 = arith.constant 0 : index
    %34 = vector.load %arg4[%c0_7, %c0_8] : memref<1x4xf32, #tpu.memory_space<vmem>>, vector<1x4xf32>
    %35 = vector.broadcast %34 : vector<1x4xf32> to vector<16x4xf32>
    %36 = arith.mulf %33, %35 : vector<16x4xf32>
    %c0_9 = arith.constant 0 : index
    %c0_10 = arith.constant 0 : index
    %37 = vector.load %arg5[%c0_9, %c0_10] : memref<1x4xf32, #tpu.memory_space<vmem>>, vector<1x4xf32>
    %38 = vector.broadcast %37 : vector<1x4xf32> to vector<16x4xf32>
    %39 = arith.addf %36, %38 : vector<16x4xf32>
    %cst_11 = arith.constant 0.000000e+00 : f32
    %40 = vector.broadcast %cst_11 : f32 to vector<16x4xf32>
    %41 = arith.minimumf %39, %40 : vector<16x4xf32>
    %42 = math.exp %41 : vector<16x4xf32>
    %cst_12 = arith.constant 0.000000e+00 : f32
    %43 = vector.broadcast %cst_12 : f32 to vector<16x4xf32>
    %44 = arith.cmpf ogt, %39, %43 : vector<16x4xf32>
    %cst_13 = arith.constant 1.000000e+00 : f32
    %45 = vector.broadcast %cst_13 : f32 to vector<16x4xf32>
    %46 = arith.subf %42, %45 : vector<16x4xf32>
    %47 = arith.select %44, %39, %46 : vector<16x4xi1>, vector<16x4xf32>
    %48 = tpu.concatenate %47, %0 in 1 : vector<16x4xf32>, vector<16x4xf32> -> vector<16x8xf32>
    %49 = arith.truncf %48 : vector<16x8xf32> to vector<16x8xbf16>
    %c0_14 = arith.constant 0 : index
    %c0_15 = arith.constant 0 : index
    %50 = vector.load %arg6[%c0_14, %c0_15] : memref<8x136xbf16, #tpu.memory_space<vmem>>, vector<8x136xbf16>
    %cst_16 = arith.constant dense<0.000000e+00> : vector<16x136xf32>
    %51 = tpu.matmul %49, %50, %cst_16 {dimension_numbers = #tpu.dot_dimension_numbers<[1], [0], [0], [1], [0, 0, 1, 1], [], []>} : vector<16x8xbf16>, vector<8x136xbf16>, vector<16x136xf32> -> vector<16x136xf32>
    %52 = vector.extract_strided_slice %51 {offsets = [0, 0], sizes = [16, 8], strides = [1, 1]} : vector<16x136xf32> to vector<16x8xf32>
    %53 = vector.extract_strided_slice %51 {offsets = [0, 128], sizes = [16, 8], strides = [1, 1]} : vector<16x136xf32> to vector<16x8xf32>
    %c0_17 = arith.constant 0 : index
    %c0_18 = arith.constant 0 : index
    %54 = vector.load %arg7[%c0_17, %c0_18] : memref<1x8xf32, #tpu.memory_space<vmem>>, vector<1x8xf32>
    %55 = vector.broadcast %54 : vector<1x8xf32> to vector<16x8xf32>
    %56 = arith.mulf %52, %55 : vector<16x8xf32>
    %c0_19 = arith.constant 0 : index
    %c0_20 = arith.constant 0 : index
    %57 = vector.load %arg8[%c0_19, %c0_20] : memref<1x8xf32, #tpu.memory_space<vmem>>, vector<1x8xf32>
    %58 = vector.broadcast %57 : vector<1x8xf32> to vector<16x8xf32>
    %59 = arith.addf %56, %58 : vector<16x8xf32>
    %cst_21 = arith.constant 0.000000e+00 : f32
    %60 = vector.broadcast %cst_21 : f32 to vector<16x8xf32>
    %61 = arith.minimumf %59, %60 : vector<16x8xf32>
    %62 = math.exp %61 : vector<16x8xf32>
    %cst_22 = arith.constant 0.000000e+00 : f32
    %63 = vector.broadcast %cst_22 : f32 to vector<16x8xf32>
    %64 = arith.cmpf ogt, %59, %63 : vector<16x8xf32>
    %cst_23 = arith.constant 1.000000e+00 : f32
    %65 = vector.broadcast %cst_23 : f32 to vector<16x8xf32>
    %66 = arith.subf %62, %65 : vector<16x8xf32>
    %67 = arith.select %64, %59, %66 : vector<16x8xi1>, vector<16x8xf32>
    %c0_24 = arith.constant 0 : index
    %c0_25 = arith.constant 0 : index
    %68 = vector.load %arg9[%c0_24, %c0_25] : memref<1x8xf32, #tpu.memory_space<vmem>>, vector<1x8xf32>
    %69 = vector.broadcast %68 : vector<1x8xf32> to vector<16x8xf32>
    %70 = arith.mulf %53, %69 : vector<16x8xf32>
    %71 = arith.addf %67, %70 : vector<16x8xf32>
    %c0_26 = arith.constant 0 : index
    %c0_27 = arith.constant 0 : index
    %72 = vector.load %arg10[%c0_26, %c0_27] : memref<1x8xf32, #tpu.memory_space<vmem>>, vector<1x8xf32>
    %73 = vector.broadcast %72 : vector<1x8xf32> to vector<16x8xf32>
    %74 = arith.addf %71, %73 : vector<16x8xf32>
    %cst_28 = arith.constant 0.000000e+00 : f32
    %75 = vector.broadcast %cst_28 : f32 to vector<16x8xf32>
    %76 = arith.minimumf %74, %75 : vector<16x8xf32>
    %77 = math.exp %76 : vector<16x8xf32>
    %cst_29 = arith.constant 0.000000e+00 : f32
    %78 = vector.broadcast %cst_29 : f32 to vector<16x8xf32>
    %79 = arith.cmpf ogt, %74, %78 : vector<16x8xf32>
    %cst_30 = arith.constant 1.000000e+00 : f32
    %80 = vector.broadcast %cst_30 : f32 to vector<16x8xf32>
    %81 = arith.subf %77, %80 : vector<16x8xf32>
    %82 = arith.select %79, %74, %81 : vector<16x8xi1>, vector<16x8xf32>
    %c0_31 = arith.constant 0 : index
    %c0_32 = arith.constant 0 : index
    %83 = vector.load %arg11[%c0_31, %c0_32] : memref<16x8xf32, #tpu.memory_space<vmem>>, vector<16x8xf32>
    tpu.vector_store %arg11[%c0_31, %c0_32], %82 {strides = array<i32>} : memref<16x8xf32, #tpu.memory_space<vmem>>, vector<16x8xf32>,
    return
  }
  func.func @transform_0(%arg0: i32) -> (i32, i32) {
    %c0_i32 = arith.constant 0 : i32
    %c0_i32_0 = arith.constant 0 : i32
    return %arg0, %c0_i32 : i32, i32
  }
  func.func @transform_1(%arg0: i32) -> (i32, i32) {
    %c0_i32 = arith.constant 0 : i32
    %c0_i32_0 = arith.constant 0 : i32
    return %arg0, %c0_i32 : i32, i32
  }
  func.func @transform_2(%arg0: i32) -> (i32, i32) {
    %c0_i32 = arith.constant 0 : i32
    %c0_i32_0 = arith.constant 0 : i32
    %c0_i32_1 = arith.constant 0 : i32
    return %c0_i32, %c0_i32_0 : i32, i32
  }
  func.func @transform_3(%arg0: i32) -> (i32, i32) {
    %c0_i32 = arith.constant 0 : i32
    %c0_i32_0 = arith.constant 0 : i32
    %c0_i32_1 = arith.constant 0 : i32
    return %c0_i32, %c0_i32_0 : i32, i32
  }
  func.func @transform_4(%arg0: i32) -> (i32, i32) {
    %c0_i32 = arith.constant 0 : i32
    %c0_i32_0 = arith.constant 0 : i32
    %c0_i32_1 = arith.constant 0 : i32
    return %c0_i32, %c0_i32_0 : i32, i32
  }
  func.func @transform_5(%arg0: i32) -> (i32, i32) {
    %c0_i32 = arith.constant 0 : i32
    %c0_i32_0 = arith.constant 0 : i32
    %c0_i32_1 = arith.constant 0 : i32
    return %c0_i32, %c0_i32_0 : i32, i32
  }
  func.func @transform_6(%arg0: i32) -> (i32, i32) {
    %c0_i32 = arith.constant 0 : i32
    %c0_i32_0 = arith.constant 0 : i32
    %c0_i32_1 = arith.constant 0 : i32
    return %c0_i32, %c0_i32_0 : i32, i32
  }
  func.func @transform_7(%arg0: i32) -> (i32, i32) {
    %c0_i32 = arith.constant 0 : i32
    %c0_i32_0 = arith.constant 0 : i32
    %c0_i32_1 = arith.constant 0 : i32
    return %c0_i32, %c0_i32_0 : i32, i32
  }
  func.func @transform_8(%arg0: i32) -> (i32, i32) {
    %c0_i32 = arith.constant 0 : i32
    %c0_i32_0 = arith.constant 0 : i32
    %c0_i32_1 = arith.constant 0 : i32
    return %c0_i32, %c0_i32_0 : i32, i32
  }
  func.func @transform_9(%arg0: i32) -> (i32, i32) {
    %c0_i32 = arith.constant 0 : i32
    %c0_i32_0 = arith.constant 0 : i32
    %c0_i32_1 = arith.constant 0 : i32
    return %c0_i32, %c0_i32_0 : i32, i32
  }
  func.func @transform_10(%arg0: i32) -> (i32, i32) {
    %c0_i32 = arith.constant 0 : i32
    %c0_i32_0 = arith.constant 0 : i32
    return %arg0, %c0_i32 : i32, i32
  }
}

module attributes {stable_mosaic.version = 11 : i64} {
  func.func @dsconv_kernel(%arg0: i32, %arg1: memref<16x4xf32, #tpu.memory_space<vmem>>, %arg2: memref<16x1xi32, #tpu.memory_space<vmem>>, %arg3: memref<3x4xf32, #tpu.memory_space<vmem>>, %arg4: memref<1x4xf32, #tpu.memory_space<vmem>>, %arg5: memref<1x4xf32, #tpu.memory_space<vmem>>, %arg6: memref<8x136xbf16, #tpu.memory_space<vmem>>, %arg7: memref<1x8xf32, #tpu.memory_space<vmem>>, %arg8: memref<1x8xf32, #tpu.memory_space<vmem>>, %arg9: memref<1x8xf32, #tpu.memory_space<vmem>>, %arg10: memref<1x8xf32, #tpu.memory_space<vmem>>, %arg11: memref<16x8xf32, #tpu.memory_space<vmem>>) attributes {dimension_semantics = [#tpu.dimension_semantics<parallel>], iteration_bounds = array<i64: 2>, scalar_prefetch = 0 : i64, scratch_operands = 0 : i64, tpu.core_type = #tpu.core_type<tc>, window_params = [{transform_indices = @transform_0, window_bounds = array<i64: 16, 4>}, {transform_indices = @transform_1, window_bounds = array<i64: 16, 1>}, {pipeline_mode = #tpu.pipeline_mode<synchronous>, transform_indices = @transform_2, window_bounds = array<i64: 3, 4>}, {pipeline_mode = #tpu.pipeline_mode<synchronous>, transform_indices = @transform_3, window_bounds = array<i64: 1, 4>}, {pipeline_mode = #tpu.pipeline_mode<synchronous>, transform_indices = @transform_4, window_bounds = array<i64: 1, 4>}, {pipeline_mode = #tpu.pipeline_mode<synchronous>, transform_indices = @transform_5, window_bounds = array<i64: 8, 136>}, {pipeline_mode = #tpu.pipeline_mode<synchronous>, transform_indices = @transform_6, window_bounds = array<i64: 1, 8>}, {pipeline_mode = #tpu.pipeline_mode<synchronous>, transform_indices = @transform_7, window_bounds = array<i64: 1, 8>}, {pipeline_mode = #tpu.pipeline_mode<synchronous>, transform_indices = @transform_8, window_bounds = array<i64: 1, 8>}, {pipeline_mode = #tpu.pipeline_mode<synchronous>, transform_indices = @transform_9, window_bounds = array<i64: 1, 8>}, {transform_indices = @transform_10, window_bounds = array<i64: 16, 8>}]} {
    %c0 = arith.constant 0 : index
    %c0_0 = arith.constant 0 : index
    %0 = vector.load %arg1[%c0, %c0_0] : memref<16x4xf32, #tpu.memory_space<vmem>>, vector<16x4xf32>
    %c0_1 = arith.constant 0 : index
    %c0_2 = arith.constant 0 : index
    %1 = vector.load %arg2[%c0_1, %c0_2] : memref<16x1xi32, #tpu.memory_space<vmem>>, vector<16x1xi32>
    %c0_3 = arith.constant 0 : index
    %c0_4 = arith.constant 0 : index
    %2 = vector.load %arg3[%c0_3, %c0_4] : memref<3x4xf32, #tpu.memory_space<vmem>>, vector<3x4xf32>
    %cst = arith.constant 0.000000e+00 : f32
    %3 = vector.broadcast %cst : f32 to vector<16x4xf32>
    %4 = vector.extract_strided_slice %2 {offsets = [0, 0], sizes = [1, 4], strides = [1, 1]} : vector<3x4xf32> to vector<1x4xf32>
    %5 = vector.extract_strided_slice %0 {offsets = [15, 0], sizes = [1, 4], strides = [1, 1]} : vector<16x4xf32> to vector<1x4xf32>
    %6 = vector.extract_strided_slice %0 {offsets = [0, 0], sizes = [15, 4], strides = [1, 1]} : vector<16x4xf32> to vector<15x4xf32>
    %7 = tpu.concatenate %5, %6 in 0 : vector<1x4xf32>, vector<15x4xf32> -> vector<16x4xf32>
    %c1_i32 = arith.constant 1 : i32
    %8 = vector.broadcast %c1_i32 : i32 to vector<16x1xi32>
    %9 = arith.cmpi sge, %1, %8 : vector<16x1xi32>
    %10 = vector.broadcast %4 : vector<1x4xf32> to vector<16x4xf32>
    %11 = arith.mulf %7, %10 : vector<16x4xf32>
    %cst_5 = arith.constant 0.000000e+00 : f32
    %12 = vector.shape_cast %9 : vector<16x1xi1> to vector<16x1xi1>
    %13 = vector.broadcast %12 : vector<16x1xi1> to vector<16x4xi1>
    %14 = vector.broadcast %cst_5 : f32 to vector<16x4xf32>
    %15 = arith.select %13, %11, %14 : vector<16x4xi1>, vector<16x4xf32>
    %16 = arith.addf %3, %15 : vector<16x4xf32>
    %17 = vector.extract_strided_slice %2 {offsets = [1, 0], sizes = [1, 4], strides = [1, 1]} : vector<3x4xf32> to vector<1x4xf32>
    %18 = vector.broadcast %17 : vector<1x4xf32> to vector<16x4xf32>
    %19 = arith.mulf %0, %18 : vector<16x4xf32>
    %20 = arith.addf %16, %19 : vector<16x4xf32>
    %21 = vector.extract_strided_slice %2 {offsets = [2, 0], sizes = [1, 4], strides = [1, 1]} : vector<3x4xf32> to vector<1x4xf32>
    %22 = vector.extract_strided_slice %0 {offsets = [1, 0], sizes = [15, 4], strides = [1, 1]} : vector<16x4xf32> to vector<15x4xf32>
    %23 = vector.extract_strided_slice %0 {offsets = [0, 0], sizes = [1, 4], strides = [1, 1]} : vector<16x4xf32> to vector<1x4xf32>
    %24 = tpu.concatenate %22, %23 in 0 : vector<15x4xf32>, vector<1x4xf32> -> vector<16x4xf32>
    %c15_i32 = arith.constant 15 : i32
    %25 = vector.broadcast %c15_i32 : i32 to vector<16x1xi32>
    %26 = arith.cmpi slt, %1, %25 : vector<16x1xi32>
    %27 = vector.broadcast %21 : vector<1x4xf32> to vector<16x4xf32>
    %28 = arith.mulf %24, %27 : vector<16x4xf32>
    %cst_6 = arith.constant 0.000000e+00 : f32
    %29 = vector.shape_cast %26 : vector<16x1xi1> to vector<16x1xi1>
    %30 = vector.broadcast %29 : vector<16x1xi1> to vector<16x4xi1>
    %31 = vector.broadcast %cst_6 : f32 to vector<16x4xf32>
    %32 = arith.select %30, %28, %31 : vector<16x4xi1>, vector<16x4xf32>
    %33 = arith.addf %20, %32 : vector<16x4xf32>
    %c0_7 = arith.constant 0 : index
    %c0_8 = arith.constant 0 : index
    %34 = vector.load %arg4[%c0_7, %c0_8] : memref<1x4xf32, #tpu.memory_space<vmem>>, vector<1x4xf32>
    %35 = vector.broadcast %34 : vector<1x4xf32> to vector<16x4xf32>
    %36 = arith.mulf %33, %35 : vector<16x4xf32>
    %c0_9 = arith.constant 0 : index
    %c0_10 = arith.constant 0 : index
    %37 = vector.load %arg5[%c0_9, %c0_10] : memref<1x4xf32, #tpu.memory_space<vmem>>, vector<1x4xf32>
    %38 = vector.broadcast %37 : vector<1x4xf32> to vector<16x4xf32>
    %39 = arith.addf %36, %38 : vector<16x4xf32>
    %cst_11 = arith.constant 0.000000e+00 : f32
    %40 = vector.broadcast %cst_11 : f32 to vector<16x4xf32>
    %41 = arith.minimumf %39, %40 : vector<16x4xf32>
    %42 = math.exp %41 : vector<16x4xf32>
    %cst_12 = arith.constant 0.000000e+00 : f32
    %43 = vector.broadcast %cst_12 : f32 to vector<16x4xf32>
    %44 = arith.cmpf ogt, %39, %43 : vector<16x4xf32>
    %cst_13 = arith.constant 1.000000e+00 : f32
    %45 = vector.broadcast %cst_13 : f32 to vector<16x4xf32>
    %46 = arith.subf %42, %45 : vector<16x4xf32>
    %47 = arith.select %44, %39, %46 : vector<16x4xi1>, vector<16x4xf32>
    %48 = tpu.concatenate %47, %0 in 1 : vector<16x4xf32>, vector<16x4xf32> -> vector<16x8xf32>
    %49 = arith.truncf %48 : vector<16x8xf32> to vector<16x8xbf16>
    %c0_14 = arith.constant 0 : index
    %c0_15 = arith.constant 0 : index
    %50 = vector.load %arg6[%c0_14, %c0_15] : memref<8x136xbf16, #tpu.memory_space<vmem>>, vector<8x136xbf16>
    %cst_16 = arith.constant dense<0.000000e+00> : vector<16x136xf32>
    %51 = tpu.matmul %49, %50, %cst_16 {dimension_numbers = #tpu.dot_dimension_numbers<[1], [0], [0], [1], [0, 0, 1, 1], [], []>} : vector<16x8xbf16>, vector<8x136xbf16>, vector<16x136xf32> -> vector<16x136xf32>
    %52 = vector.extract_strided_slice %51 {offsets = [0, 0], sizes = [16, 8], strides = [1, 1]} : vector<16x136xf32> to vector<16x8xf32>
    %53 = vector.extract_strided_slice %51 {offsets = [0, 128], sizes = [16, 8], strides = [1, 1]} : vector<16x136xf32> to vector<16x8xf32>
    %c0_17 = arith.constant 0 : index
    %c0_18 = arith.constant 0 : index
    %54 = vector.load %arg7[%c0_17, %c0_18] : memref<1x8xf32, #tpu.memory_space<vmem>>, vector<1x8xf32>
    %55 = vector.broadcast %54 : vector<1x8xf32> to vector<16x8xf32>
    %56 = arith.mulf %52, %55 : vector<16x8xf32>
    %c0_19 = arith.constant 0 : index
    %c0_20 = arith.constant 0 : index
    %57 = vector.load %arg8[%c0_19, %c0_20] : memref<1x8xf32, #tpu.memory_space<vmem>>, vector<1x8xf32>
    %58 = vector.broadcast %57 : vector<1x8xf32> to vector<16x8xf32>
    %59 = arith.addf %56, %58 : vector<16x8xf32>
    %cst_21 = arith.constant 0.000000e+00 : f32
    %60 = vector.broadcast %cst_21 : f32 to vector<16x8xf32>
    %61 = arith.minimumf %59, %60 : vector<16x8xf32>
    %62 = math.exp %61 : vector<16x8xf32>
    %cst_22 = arith.constant 0.000000e+00 : f32
    %63 = vector.broadcast %cst_22 : f32 to vector<16x8xf32>
    %64 = arith.cmpf ogt, %59, %63 : vector<16x8xf32>
    %cst_23 = arith.constant 1.000000e+00 : f32
    %65 = vector.broadcast %cst_23 : f32 to vector<16x8xf32>
    %66 = arith.subf %62, %65 : vector<16x8xf32>
    %67 = arith.select %64, %59, %66 : vector<16x8xi1>, vector<16x8xf32>
    %c0_24 = arith.constant 0 : index
    %c0_25 = arith.constant 0 : index
    %68 = vector.load %arg9[%c0_24, %c0_25] : memref<1x8xf32, #tpu.memory_space<vmem>>, vector<1x8xf32>
    %69 = vector.broadcast %68 : vector<1x8xf32> to vector<16x8xf32>
    %70 = arith.mulf %53, %69 : vector<16x8xf32>
    %71 = arith.addf %67, %70 : vector<16x8xf32>
    %c0_26 = arith.constant 0 : index
    %c0_27 = arith.constant 0 : index
    %72 = vector.load %arg10[%c0_26, %c0_27] : memref<1x8xf32, #tpu.memory_space<vmem>>, vector<1x8xf32>
    %73 = vector.broadcast %72 : vector<1x8xf32> to vector<16x8xf32>
    %74 = arith.addf %71, %73 : vector<16x8xf32>
    %cst_28 = arith.constant 0.000000e+00 : f32
    %75 = vector.broadcast %cst_28 : f32 to vector<16x8xf32>
    %76 = arith.minimumf %74, %75 : vector<16x8xf32>
    %77 = math.exp %76 : vector<16x8xf32>
    %cst_29 = arith.constant 0.000000e+00 : f32
    %78 = vector.broadcast %cst_29 : f32 to vector<16x8xf32>
    %79 = arith.cmpf ogt, %74, %78 : vector<16x8xf32>
    %cst_30 = arith.constant 1.000000e+00 : f32
    %80 = vector.broadcast %cst_30 : f32 to vector<16x8xf32>
    %81 = arith.subf %77, %80 : vector<16x8xf32>
    %82 = arith.select %79, %74, %81 : vector<16x8xi1>, vector<16x8xf32>
    %c0_31 = arith.constant 0 : index
    %c0_32 = arith.constant 0 : index
    %83 = vector.load %arg11[%c0_31, %c0_32] : memref<16x8xf32, #tpu.memory_space<vmem>>, vector<16x8xf32>
    tpu.vector_store %arg11[%c0_31, %c0_32], %82 {strides = array<i32>} : memref<16x8xf32, #tpu.memory_space<vmem>>, vector<16x8xf32>,
    return
  }
  func.func @transform_0(%arg0: i32) -> (i32, i32) {
    %c0_i32 = arith.constant 0 : i32
    %c0_i32_0 = arith.constant 0 : i32
    return %arg0, %c0_i32 : i32, i32
  }
  func.func @transform_1(%arg0: i32) -> (i32, i32) {
    %c0_i32 = arith.constant 0 : i32
    %c0_i32_0 = arith.constant 0 : i32
    return %arg0, %c0_i32 : i32, i32
  }
  func.func @transform_2(%arg0: i32) -> (i32, i32) {
    %c0_i32 = arith.constant 0 : i32
    %c0_i32_0 = arith.constant 0 : i32
    %c0_i32_1 = arith.constant 0 : i32
    return %c0_i32, %c0_i32_0 : i32, i32
  }
  func.func @transform_3(%arg0: i32) -> (i32, i32) {
    %c0_i32 = arith.constant 0 : i32
    %c0_i32_0 = arith.constant 0 : i32
    %c0_i32_1 = arith.constant 0 : i32
    return %c0_i32, %c0_i32_0 : i32, i32
  }
  func.func @transform_4(%arg0: i32) -> (i32, i32) {
    %c0_i32 = arith.constant 0 : i32
    %c0_i32_0 = arith.constant 0 : i32
    %c0_i32_1 = arith.constant 0 : i32
    return %c0_i32, %c0_i32_0 : i32, i32
  }
  func.func @transform_5(%arg0: i32) -> (i32, i32) {
    %c0_i32 = arith.constant 0 : i32
    %c0_i32_0 = arith.constant 0 : i32
    %c0_i32_1 = arith.constant 0 : i32
    return %c0_i32, %c0_i32_0 : i32, i32
  }
  func.func @transform_6(%arg0: i32) -> (i32, i32) {
    %c0_i32 = arith.constant 0 : i32
    %c0_i32_0 = arith.constant 0 : i32
    %c0_i32_1 = arith.constant 0 : i32
    return %c0_i32, %c0_i32_0 : i32, i32
  }
  func.func @transform_7(%arg0: i32) -> (i32, i32) {
    %c0_i32 = arith.constant 0 : i32
    %c0_i32_0 = arith.constant 0 : i32
    %c0_i32_1 = arith.constant 0 : i32
    return %c0_i32, %c0_i32_0 : i32, i32
  }
  func.func @transform_8(%arg0: i32) -> (i32, i32) {
    %c0_i32 = arith.constant 0 : i32
    %c0_i32_0 = arith.constant 0 : i32
    %c0_i32_1 = arith.constant 0 : i32
    return %c0_i32, %c0_i32_0 : i32, i32
  }
  func.func @transform_9(%arg0: i32) -> (i32, i32) {
    %c0_i32 = arith.constant 0 : i32
    %c0_i32_0 = arith.constant 0 : i32
    %c0_i32_1 = arith.constant 0 : i32
    return %c0_i32, %c0_i32_0 : i32, i32
  }
  func.func @transform_10(%arg0: i32) -> (i32, i32) {
    %c0_i32 = arith.constant 0 : i32
    %c0_i32_0 = arith.constant 0 : i32
    return %arg0, %c0_i32 : i32, i32
  }
}

</mosaic_0001>

<llo_original>
// kernel: tpu_custom_call.1
$region0: #{tpu_custom_call.1}
  #allocation0 [shape = 'u32[]', space=smem, size = 0x4, offset = 0x4, fixed_abs, tag = 'smem constant byte address 0x4 - core index']
  #allocation1 [shape = 'u32[144,128]{1,0:T(1,128)}', space=vmem, size = 0x12000, scoped, tag = 'internal scratch']
  %s0 = inlined_call_operand.hbm [shape: f32[8,128], index: 0, kind: input, shape index: {}]
  %s1 = inlined_call_operand.hbm [shape: f32[8,128], index: 1, kind: output, shape index: {}]
  %s2 = sld [smem:[#allocation0]]
  $region18: #{tpu_custom_call.1} parent=0
    _
  %s4 = ssub.s32 1, %s2
  %s5 = scalar_select 0, %s4, %s2
  $region1: #{tpu_custom_call.1} parent=0
    #allocation2 [shape = 'u8[4096]{0}', space=vmem, size = 0x1000, scoped, tag = 'input window, operand 0, single buffered']
    #allocation3 [shape = 's32[1]{0}', space=sflag, size = 0x4, scoped, tag = 'scoped memory for tpu_custom_call.1']
    #allocation4 [shape = 's32[1]{0}', space=sflag, size = 0x4, scoped, tag = 'scoped memory for tpu_custom_call.1']
    #allocation5 [shape = 'u8[4096]{0}', space=vmem, size = 0x1000, scoped, tag = 'output window, operand 0, single buffered']
    %6 = vsyncpa [#allocation3], 0
    %7 = vsyncpa [#allocation4], 0
    // Predicated region
    $region2: #{tpu_custom_call.1} parent=1 // pred_check
      _
    $region3: #{tpu_custom_call.1} parent=1 // pred_check_branch
      %9 = sbr.rel (0) target = $region5
    $region4: #{tpu_custom_call.1} parent=1 // pred_region
      %s11 = ssub.s32 128, 128
      %12 = vsyncadd [#allocation3], %s11
      %s14 = sshll.u32 [#allocation2], 4
      %s15 = int_to_ptr.vmem [resolvable:$true] %s14
      %17 = dma.hbm_to_vmem [thread:$0]  %s0, 128, %s15, [#allocation3]
    $region5: #{tpu_custom_call.1} parent=1 // pred_fallthru
      _
    // Predicated region
    $region6: #{tpu_custom_call.1} parent=1 // pred_check
      _
    $region7: #{tpu_custom_call.1} parent=1 // pred_check_branch
      %19 = sbr.rel (0) target = $region9
    $region8: #{tpu_custom_call.1} parent=1 // pred_region
      %20 = dma.done [#allocation3], 128
    $region9: #{tpu_custom_call.1} parent=1 // pred_fallthru
      _
    %v21 = vld [vmem:[#allocation2] sm:$0xff]
    %v22 = vrot.slane %v21, 7
    %23 = vst [vmem:[#allocation5] sm:$0xff] %v22
    // Predicated region
    $region10: #{tpu_custom_call.1} parent=1 // pred_check
      _
    $region11: #{tpu_custom_call.1} parent=1 // pred_check_branch
      %25 = sbr.rel (0) target = $region13
    $region12: #{tpu_custom_call.1} parent=1 // pred_region
      %s27 = ssub.s32 128, 128
      %28 = vsyncadd [#allocation4], %s27
      %s30 = sshll.u32 [#allocation5], 4
      %s31 = int_to_ptr.vmem [resolvable:$true] %s30
      %33 = dma.vmem_to_hbm [thread:$0]  %s31, 128, %s1, [#allocation4]
    $region13: #{tpu_custom_call.1} parent=1 // pred_fallthru
      _
    // Predicated region
    $region14: #{tpu_custom_call.1} parent=1 // pred_check
      _
    $region15: #{tpu_custom_call.1} parent=1 // pred_check_branch
      %35 = sbr.rel (0) target = $region17
    $region16: #{tpu_custom_call.1} parent=1 // pred_region
      %36 = dma.done [#allocation4], 128
    $region17: #{tpu_custom_call.1} parent=1 // pred_fallthru
      _
    %37 = vsyncpa [#allocation3], 1
    %38 = vsyncpa [#allocation4], 1

// kernel: tpu_custom_call.1
$region0: #{tpu_custom_call.1}
  #allocation0 [shape = 'u32[]', space=smem, size = 0x4, offset = 0x4, fixed_abs, tag = 'smem constant byte address 0x4 - core index']
  #allocation1 [shape = 'u32[144,128]{1,0:T(1,128)}', space=vmem, size = 0x12000, scoped, tag = 'internal scratch']
  %s0 = inlined_call_operand.vmem [shape: f32[32,4], index: 0, kind: input, shape index: {}]
  %s1 = inlined_call_operand.vmem [shape: s32[32,1], index: 1, kind: input, shape index: {}]
  %s2 = inlined_call_operand.vmem [shape: f32[3,4], index: 2, kind: input, shape index: {}]
  %s3 = inlined_call_operand.vmem [shape: f32[1,4], index: 3, kind: input, shape index: {}]
  %s4 = inlined_call_operand.vmem [shape: f32[1,4], index: 4, kind: input, shape index: {}]
  %s5 = inlined_call_operand.vmem [shape: bf16[8,136], index: 5, kind: input, shape index: {}]
  %s6 = inlined_call_operand.vmem [shape: f32[1,8], index: 6, kind: input, shape index: {}]
  %s7 = inlined_call_operand.vmem [shape: f32[1,8], index: 7, kind: input, shape index: {}]
  %s8 = inlined_call_operand.vmem [shape: f32[1,8], index: 8, kind: input, shape index: {}]
  %s9 = inlined_call_operand.vmem [shape: f32[1,8], index: 9, kind: input, shape index: {}]
  %s10 = inlined_call_operand.vmem [shape: f32[32,8], index: 10, kind: output, shape index: {}]
  %s11 = sld [smem:[#allocation0]]
  $region73: #{tpu_custom_call.1} parent=0
    _
  %s13 = ssub.s32 1, %s11
  %s14 = scalar_select 0, %s13, %s11
  loop: start=0, step=1, limit=4
  $region2: #{tpu_custom_call.1} parent=0 // loop_pre_header
    _
  $region3: #{tpu_custom_call.1} parent=0 // loop_header
    %s16 = sphi 0, %s20
    %p17 = scmp.ge.s32.totalorder %s16, 4
    %s26 = sphi 0, %s28
    %s29 = sphi 0, %s26
    %s30 = sphi 0, %s29
    %s46 = sphi 0, %s30
    %s52 = sphi 0, %s54
    %s55 = sphi 0, %s52
    %s56 = sphi 0, %s55
    %s72 = sphi 0, %s56
    %s76 = sphi 0, %s76
    %s78 = sphi 0, %s76
    %s79 = sphi 0, %s78
    %s93 = sphi 0, %s79
    %s97 = sphi 0, %s97
    %s99 = sphi 0, %s97
    %s100 = sphi 0, %s99
    %s114 = sphi 0, %s100
    %s118 = sphi 0, %s118
    %s120 = sphi 0, %s118
    %s121 = sphi 0, %s120
    %s135 = sphi 0, %s121
    %s139 = sphi 0, %s139
    %s141 = sphi 0, %s139
    %s142 = sphi 0, %s141
    %s156 = sphi 0, %s142
    %s160 = sphi 0, %s160
    %s162 = sphi 0, %s160
    %s163 = sphi 0, %s162
    %s177 = sphi 0, %s163
    %s181 = sphi 0, %s181
    %s183 = sphi 0, %s181
    %s184 = sphi 0, %s183
    %s198 = sphi 0, %s184
    %s202 = sphi 0, %s202
    %s204 = sphi 0, %s202
    %s205 = sphi 0, %s204
    %s219 = sphi 0, %s205
    %s223 = sphi 0, %s223
    %s225 = sphi 0, %s223
    %s226 = sphi 0, %s225
    %s240 = sphi 0, %s226
    %s246 = sphi 0, %s248
    %s249 = sphi 0, %s246
    %s250 = sphi 0, %s249
    %s266 = sphi 0, %s250
  $region4: #{tpu_custom_call.1} parent=0 // loop_header_branch
    %19 = sbr.rel (%p17) target = $region8
  $region5: #{tpu_custom_call.1} parent=0 // loop_body
    %s21 = ssub.s32 %s16, 1
    %s22 = ssub.s32 %s16, 2
    %s23 = sadd.s32 %s16, 1
    %s24 = ssub.s32 %s16, %s23
    %p25 = scmp.eq.s32.totalorder %s24, 0
    %s27 = sadd.s32 %s26, 1
    %s28 = scalar_select %p25, %s26, %s27
    %p31 = pneg %p25
    %p32 = scmp.eq.s32.totalorder %s16, 1
    %p33 = por %p31, %p32
    %p34 = scmp.ne.s32.totalorder %s26, %s29
    %p35 = scmp.eq.s32.totalorder %s16, 0
    %p36 = por %p34, %p35
    %p37 = scmp.ne.s32.totalorder %s26, %s29
    %p38 = scmp.eq.s32.totalorder %s21, 1
    %p39 = por %p37, %p38
    %p40 = scmp.ne.s32.totalorder %s29, %s30
    %p41 = scmp.eq.s32.totalorder %s21, 0
    %p42 = por %p40, %p41
    %p43 = scmp.ne.s32.totalorder %s29, %s30
    %p44 = scmp.eq.s32.totalorder %s22, 1
    %p45 = por %p43, %p44
    %p47 = scmp.ne.s32.totalorder %s30, %s46
    %p48 = scmp.eq.s32.totalorder %s22, 0
    %p49 = por %p47, %p48
    %s50 = ssub.s32 %s16, %s23
    %p51 = scmp.eq.s32.totalorder %s50, 0
    %s53 = sadd.s32 %s52, 1
    %s54 = scalar_select %p51, %s52, %s53
    %p57 = pneg %p51
    %p58 = scmp.eq.s32.totalorder %s16, 1
    %p59 = por %p57, %p58
    %p60 = scmp.ne.s32.totalorder %s52, %s55
    %p61 = scmp.eq.s32.totalorder %s16, 0
    %p62 = por %p60, %p61
    %p63 = scmp.ne.s32.totalorder %s52, %s55
    %p64 = scmp.eq.s32.totalorder %s21, 1
    %p65 = por %p63, %p64
    %p66 = scmp.ne.s32.totalorder %s55, %s56
    %p67 = scmp.eq.s32.totalorder %s21, 0
    %p68 = por %p66, %p67
    %p69 = scmp.ne.s32.totalorder %s55, %s56
    %p70 = scmp.eq.s32.totalorder %s22, 1
    %p71 = por %p69, %p70
    %p73 = scmp.ne.s32.totalorder %s56, %s72
    %p74 = scmp.eq.s32.totalorder %s22, 0
    %p75 = por %p73, %p74
    %s77 = sadd.s32 %s76, 1
    %p80 = scmp.eq.s32.totalorder %s16, 1
    %p81 = scmp.ne.s32.totalorder %s76, %s78
    %p82 = scmp.eq.s32.totalorder %s16, 0
    %p83 = por %p81, %p82
    %p84 = scmp.ne.s32.totalorder %s76, %s78
    %p85 = scmp.eq.s32.totalorder %s21, 1
    %p86 = por %p84, %p85
    %p87 = scmp.ne.s32.totalorder %s78, %s79
    %p88 = scmp.eq.s32.totalorder %s21, 0
    %p89 = por %p87, %p88
    %p90 = scmp.ne.s32.totalorder %s78, %s79
    %p91 = scmp.eq.s32.totalorder %s22, 1
    %p92 = por %p90, %p91
    %p94 = scmp.ne.s32.totalorder %s79, %s93
    %p95 = scmp.eq.s32.totalorder %s22, 0
    %p96 = por %p94, %p95
    %s98 = sadd.s32 %s97, 1
    %p101 = scmp.eq.s32.totalorder %s16, 1
    %p102 = scmp.ne.s32.totalorder %s97, %s99
    %p103 = scmp.eq.s32.totalorder %s16, 0
    %p104 = por %p102, %p103
    %p105 = scmp.ne.s32.totalorder %s97, %s99
    %p106 = scmp.eq.s32.totalorder %s21, 1
    %p107 = por %p105, %p106
    %p108 = scmp.ne.s32.totalorder %s99, %s100
    %p109 = scmp.eq.s32.totalorder %s21, 0
    %p110 = por %p108, %p109
    %p111 = scmp.ne.s32.totalorder %s99, %s100
    %p112 = scmp.eq.s32.totalorder %s22, 1
    %p113 = por %p111, %p112
    %p115 = scmp.ne.s32.totalorder %s100, %s114
    %p116 = scmp.eq.s32.totalorder %s22, 0
    %p117 = por %p115, %p116
    %s119 = sadd.s32 %s118, 1
    %p122 = scmp.eq.s32.totalorder %s16, 1
    %p123 = scmp.ne.s32.totalorder %s118, %s120
    %p124 = scmp.eq.s32.totalorder %s16, 0
    %p125 = por %p123, %p124
    %p126 = scmp.ne.s32.totalorder %s118, %s120
    %p127 = scmp.eq.s32.totalorder %s21, 1
    %p128 = por %p126, %p127
    %p129 = scmp.ne.s32.totalorder %s120, %s121
    %p130 = scmp.eq.s32.totalorder %s21, 0
    %p131 = por %p129, %p130
    %p132 = scmp.ne.s32.totalorder %s120, %s121
    %p133 = scmp.eq.s32.totalorder %s22, 1
    %p134 = por %p132, %p133
    %p136 = scmp.ne.s32.totalorder %s121, %s135
    %p137 = scmp.eq.s32.totalorder %s22, 0
    %p138 = por %p136, %p137
    %s140 = sadd.s32 %s139, 1
    %p143 = scmp.eq.s32.totalorder %s16, 1
    %p144 = scmp.ne.s32.totalorder %s139, %s141
    %p145 = scmp.eq.s32.totalorder %s16, 0
    %p146 = por %p144, %p145
    %p147 = scmp.ne.s32.totalorder %s139, %s141
    %p148 = scmp.eq.s32.totalorder %s21, 1
    %p149 = por %p147, %p148
    %p150 = scmp.ne.s32.totalorder %s141, %s142
    %p151 = scmp.eq.s32.totalorder %s21, 0
    %p152 = por %p150, %p151
    %p153 = scmp.ne.s32.totalorder %s141, %s142
    %p154 = scmp.eq.s32.totalorder %s22, 1
    %p155 = por %p153, %p154
    %p157 = scmp.ne.s32.totalorder %s142, %s156
    %p158 = scmp.eq.s32.totalorder %s22, 0
    %p159 = por %p157, %p158
    %s161 = sadd.s32 %s160, 1
    %p164 = scmp.eq.s32.totalorder %s16, 1
    %p165 = scmp.ne.s32.totalorder %s160, %s162
    %p166 = scmp.eq.s32.totalorder %s16, 0
    %p167 = por %p165, %p166
    %p168 = scmp.ne.s32.totalorder %s160, %s162
    %p169 = scmp.eq.s32.totalorder %s21, 1
    %p170 = por %p168, %p169
    %p171 = scmp.ne.s32.totalorder %s162, %s163
    %p172 = scmp.eq.s32.totalorder %s21, 0
    %p173 = por %p171, %p172
    %p174 = scmp.ne.s32.totalorder %s162, %s163
    %p175 = scmp.eq.s32.totalorder %s22, 1
    %p176 = por %p174, %p175
    %p178 = scmp.ne.s32.totalorder %s163, %s177
    %p179 = scmp.eq.s32.totalorder %s22, 0
    %p180 = por %p178, %p179
    %s182 = sadd.s32 %s181, 1
    %p185 = scmp.eq.s32.totalorder %s16, 1
    %p186 = scmp.ne.s32.totalorder %s181, %s183
    %p187 = scmp.eq.s32.totalorder %s16, 0
    %p188 = por %p186, %p187
    %p189 = scmp.ne.s32.totalorder %s181, %s183
    %p190 = scmp.eq.s32.totalorder %s21, 1
    %p191 = por %p189, %p190
    %p192 = scmp.ne.s32.totalorder %s183, %s184
    %p193 = scmp.eq.s32.totalorder %s21, 0
    %p194 = por %p192, %p193
    %p195 = scmp.ne.s32.totalorder %s183, %s184
    %p196 = scmp.eq.s32.totalorder %s22, 1
    %p197 = por %p195, %p196
    %p199 = scmp.ne.s32.totalorder %s184, %s198
    %p200 = scmp.eq.s32.totalorder %s22, 0
    %p201 = por %p199, %p200
    %s203 = sadd.s32 %s202, 1
    %p206 = scmp.eq.s32.totalorder %s16, 1
    %p207 = scmp.ne.s32.totalorder %s202, %s204
    %p208 = scmp.eq.s32.totalorder %s16, 0
    %p209 = por %p207, %p208
    %p210 = scmp.ne.s32.totalorder %s202, %s204
    %p211 = scmp.eq.s32.totalorder %s21, 1
    %p212 = por %p210, %p211
    %p213 = scmp.ne.s32.totalorder %s204, %s205
    %p214 = scmp.eq.s32.totalorder %s21, 0
    %p215 = por %p213, %p214
    %p216 = scmp.ne.s32.totalorder %s204, %s205
    %p217 = scmp.eq.s32.totalorder %s22, 1
    %p218 = por %p216, %p217
    %p220 = scmp.ne.s32.totalorder %s205, %s219
    %p221 = scmp.eq.s32.totalorder %s22, 0
    %p222 = por %p220, %p221
    %s224 = sadd.s32 %s223, 1
    %p227 = scmp.eq.s32.totalorder %s16, 1
    %p228 = scmp.ne.s32.totalorder %s223, %s225
    %p229 = scmp.eq.s32.totalorder %s16, 0
    %p230 = por %p228, %p229
    %p231 = scmp.ne.s32.totalorder %s223, %s225
    %p232 = scmp.eq.s32.totalorder %s21, 1
    %p233 = por %p231, %p232
    %p234 = scmp.ne.s32.totalorder %s225, %s226
    %p235 = scmp.eq.s32.totalorder %s21, 0
    %p236 = por %p234, %p235
    %p237 = scmp.ne.s32.totalorder %s225, %s226
    %p238 = scmp.eq.s32.totalorder %s22, 1
    %p239 = por %p237, %p238
    %p241 = scmp.ne.s32.totalorder %s226, %s240
    %p242 = scmp.eq.s32.totalorder %s22, 0
    %p243 = por %p241, %p242
    %s244 = ssub.s32 %s16, %s23
    %p245 = scmp.eq.s32.totalorder %s244, 0
    %s247 = sadd.s32 %s246, 1
    %s248 = scalar_select %p245, %s246, %s247
    %p251 = pneg %p245
    %p252 = scmp.eq.s32.totalorder %s16, 1
    %p253 = por %p251, %p252
    %p254 = scmp.ne.s32.totalorder %s246, %s249
    %p255 = scmp.eq.s32.totalorder %s16, 0
    %p256 = por %p254, %p255
    %p257 = scmp.ne.s32.totalorder %s246, %s249
    %p258 = scmp.eq.s32.totalorder %s21, 1
    %p259 = por %p257, %p258
    %p260 = scmp.ne.s32.totalorder %s249, %s250
    %p261 = scmp.eq.s32.totalorder %s21, 0
    %p262 = por %p260, %p261
    %p263 = scmp.ne.s32.totalorder %s249, %s250
    %p264 = scmp.eq.s32.totalorder %s22, 1
    %p265 = por %p263, %p264
    %p267 = scmp.ne.s32.totalorder %s250, %s266
    %p268 = scmp.eq.s32.totalorder %s22, 0
    %p269 = por %p267, %p268
    %p270 = scmp.le.s32.totalorder 1, %s16
    %p271 = scmp.lt.s32.totalorder %s16, 3
    %p272 = pnand %p270, %p271
    %p273 = pneg %p272
    // Predicated region
    $region9: #{tpu_custom_call.1} parent=5 // pred_check
      _
    $region10: #{tpu_custom_call.1} parent=5 // pred_check_branch
      %275 = sbr.rel (%p272) target = $region12
    $region11: #{tpu_custom_call.1} parent=5 // pred_region
      %s276 = ssub.s32 %s16, 1
      // Predicated region
      $region13: #{tpu_custom_call.1} parent=11 // pred_check
        %p277 = pneg %p89
      $region14: #{tpu_custom_call.1} parent=11 // pred_check_branch
        %279 = sbr.rel (%p277) target = $region16
      $region15: #{tpu_custom_call.1} parent=11 // pred_region
        _
      $region16: #{tpu_custom_call.1} parent=11 // pred_fallthru
        _
      // Predicated region
      $region17: #{tpu_custom_call.1} parent=11 // pred_check
        %p280 = pneg %p110
      $region18: #{tpu_custom_call.1} parent=11 // pred_check_branch
        %282 = sbr.rel (%p280) target = $region20
      $region19: #{tpu_custom_call.1} parent=11 // pred_region
        _
      $region20: #{tpu_custom_call.1} parent=11 // pred_fallthru
        _
      // Predicated region
      $region21: #{tpu_custom_call.1} parent=11 // pred_check
        %p283 = pneg %p131
      $region22: #{tpu_custom_call.1} parent=11 // pred_check_branch
        %285 = sbr.rel (%p283) target = $region24
      $region23: #{tpu_custom_call.1} parent=11 // pred_region
        _
      $region24: #{tpu_custom_call.1} parent=11 // pred_fallthru
        _
      // Predicated region
      $region25: #{tpu_custom_call.1} parent=11 // pred_check
        %p286 = pneg %p152
      $region26: #{tpu_custom_call.1} parent=11 // pred_check_branch
        %288 = sbr.rel (%p286) target = $region28
      $region27: #{tpu_custom_call.1} parent=11 // pred_region
        _
      $region28: #{tpu_custom_call.1} parent=11 // pred_fallthru
        _
      // Predicated region
      $region29: #{tpu_custom_call.1} parent=11 // pred_check
        %p289 = pneg %p173
      $region30: #{tpu_custom_call.1} parent=11 // pred_check_branch
        %291 = sbr.rel (%p289) target = $region32
      $region31: #{tpu_custom_call.1} parent=11 // pred_region
        _
      $region32: #{tpu_custom_call.1} parent=11 // pred_fallthru
        _
      // Predicated region
      $region33: #{tpu_custom_call.1} parent=11 // pred_check
        %p292 = pneg %p194
      $region34: #{tpu_custom_call.1} parent=11 // pred_check_branch
        %294 = sbr.rel (%p292) target = $region36
      $region35: #{tpu_custom_call.1} parent=11 // pred_region
        _
      $region36: #{tpu_custom_call.1} parent=11 // pred_fallthru
        _
      // Predicated region
      $region37: #{tpu_custom_call.1} parent=11 // pred_check
        %p295 = pneg %p215
      $region38: #{tpu_custom_call.1} parent=11 // pred_check_branch
        %297 = sbr.rel (%p295) target = $region40
      $region39: #{tpu_custom_call.1} parent=11 // pred_region
        _
      $region40: #{tpu_custom_call.1} parent=11 // pred_fallthru
        _
      // Predicated region
      $region41: #{tpu_custom_call.1} parent=11 // pred_check
        %p298 = pneg %p236
      $region42: #{tpu_custom_call.1} parent=11 // pred_check_branch
        %300 = sbr.rel (%p298) target = $region44
      $region43: #{tpu_custom_call.1} parent=11 // pred_region
        _
      $region44: #{tpu_custom_call.1} parent=11 // pred_fallthru
        _
    $region12: #{tpu_custom_call.1} parent=5 // pred_fallthru
      _
    %p301 = scmp.lt.s32.totalorder %s16, 2
    // Predicated region
    $region45: #{tpu_custom_call.1} parent=5 // pred_check
      %p302 = pneg %p301
    $region46: #{tpu_custom_call.1} parent=5 // pred_check_branch
      %304 = sbr.rel (%p302) target = $region48
    $region47: #{tpu_custom_call.1} parent=5 // pred_region
      // Predicated region
      $region49: #{tpu_custom_call.1} parent=47 // pred_check
        %p305 = pneg %p36
      $region50: #{tpu_custom_call.1} parent=47 // pred_check_branch
        %307 = sbr.rel (%p305) target = $region52
      $region51: #{tpu_custom_call.1} parent=47 // pred_region
        %s308 = smul.u32 2, %s16
        %p309 = scmp.lt.s32.totalorder %s308, 3
        %s310 = scalar_select %p309, %s308, 3
        %s311 = smul.addr %s310, 8
        %s312 = scalar_lea.vmem %s0, %s311
        %s313 = smul.u32 2, %s16
      $region52: #{tpu_custom_call.1} parent=47 // pred_fallthru
        _
      // Predicated region
      $region53: #{tpu_custom_call.1} parent=47 // pred_check
        %p314 = pneg %p62
      $region54: #{tpu_custom_call.1} parent=47 // pred_check_branch
        %316 = sbr.rel (%p314) target = $region56
      $region55: #{tpu_custom_call.1} parent=47 // pred_region
        %s317 = smul.u32 2, %s16
        %p318 = scmp.lt.s32.totalorder %s317, 3
        %s319 = scalar_select %p318, %s317, 3
        %s320 = smul.addr %s319, 8
        %s321 = scalar_lea.vmem %s1, %s320
        %s322 = smul.u32 2, %s16
      $region56: #{tpu_custom_call.1} parent=47 // pred_fallthru
        _
    $region48: #{tpu_custom_call.1} parent=5 // pred_fallthru
      _
    %p323 = scmp.le.s32.totalorder 1, %s16
    %p324 = scmp.lt.s32.totalorder %s16, 3
    %p325 = pnand %p323, %p324
    %p326 = pneg %p325
    // Predicated region
    $region57: #{tpu_custom_call.1} parent=5 // pred_check
      _
    $region58: #{tpu_custom_call.1} parent=5 // pred_check_branch
      %328 = sbr.rel (%p325) target = $region60
    $region59: #{tpu_custom_call.1} parent=5 // pred_region
      %s329 = ssub.s32 %s16, 1
      %s330 = smul.u32 2, %s21
      %p331 = scmp.lt.s32.totalorder %s330, 3
      %s332 = scalar_select %p331, %s330, 3
      %s333 = smul.addr %s332, 8
      %s334 = scalar_lea.vmem %s0, %s333
      %p335 = pneg %p42
      %p336 = pneg %p39
      %s337 = smul.u32 2, %s21
      %p338 = scmp.lt.s32.totalorder %s337, 3
      %s339 = scalar_select %p338, %s337, 3
      %s340 = smul.addr %s339, 8
      %s341 = scalar_lea.vmem %s1, %s340
      %p342 = pneg %p68
      %p343 = pneg %p65
      %p344 = pneg %p89
      %p345 = pneg %p86
      %p346 = pneg %p110
      %p347 = pneg %p107
      %p348 = pneg %p131
      %p349 = pneg %p128
      %p350 = pneg %p152
      %p351 = pneg %p149
      %p352 = pneg %p173
      %p353 = pneg %p170
      %p354 = pneg %p194
      %p355 = pneg %p191
      %p356 = pneg %p215
      %p357 = pneg %p212
      %p358 = pneg %p236
      %p359 = pneg %p233
      %p360 = pneg %p262
      %p361 = pneg %p259
      %s362 = smul.u32 2, %s21
      %p363 = scmp.lt.s32.totalorder %s362, 3
      %s364 = scalar_select %p363, %s362, 3
      %s365 = smul.addr %s364, 8
      %s366 = scalar_lea.vmem %s10, %s365
      %s367 = smul.u32 2, %s21
      %p368 = scmp.lt.s32.totalorder %s367, 3
      %s369 = scalar_select %p368, %s367, 3
      %s370 = smul.addr %s369, 8
      %s371 = scalar_lea.vmem %s0, %s370
      %s372 = smul.u32 2, %s21
      %s373 = smul.u32 2, %s21
      %p374 = scmp.lt.s32.totalorder %s373, 3
      %s375 = scalar_select %p374, %s373, 3
      %s376 = smul.addr %s375, 8
      %s377 = scalar_lea.vmem %s1, %s376
      %s378 = smul.u32 2, %s21
      %s379 = smul.u32 2, %s21
      %p380 = scmp.lt.s32.totalorder %s379, 3
      %s381 = scalar_select %p380, %s379, 3
      %s382 = smul.addr %s381, 8
      %s383 = scalar_lea.vmem %s10, %s382
      %s384 = smul.u32 2, %s21
      %v386 = vld [vmem:[%s371] sm:$0xff]
      %v387 = vld [vmem:[%s371 + $0x8] sm:$0xff]
      %v388 = vld [vmem:[%s377] sm:$0xff]
      %v389 = vld [vmem:[%s377 + $0x8] sm:$0xff]
      %v390 = vld [vmem:[%s2] sm:$0x7]
      %v392 = vrot.slane %v387, 7
      %vm395 = vcmask 1040384
      %v396 = vrot.slane %v386, 7
      %v397 = vsel %vm395, %v396, %v392
      %v400 = vsel %vm395, %v392, %v396
      %vm401 = vcmp.ge.s32.totalorder %v388, 1
      %vm402 = vcmp.ge.s32.totalorder %v389, 1
      %v403 = vlaneseq
      %v404 = vshrl.u32 %v403, 7
      %v405 = vsub.s32 0, %v404
      %v406 = vrot.slane %v390, %v405
      %v407 = vmul.f32 %v400, %v406
      %v408 = vmul.f32 %v397, %v406
      %v409 = vsel %vm401, 1, 0
      %v410 = vsel %vm402, 1, 0
      %411 = vset.pattern.permute.xlu0 0
      %412 = vperm.xlu0 %411, %v409
      %v413 = vpop.permute.xlu0 %412
      %414 = vset.pattern.permute.xlu0 0
      %415 = vperm.xlu0 %414, %v410
      %v416 = vpop.permute.xlu0 %415
      %vm417 = vcmp.eq.s32.totalorder %v413, 1
      %vm418 = vcmp.eq.s32.totalorder %v416, 1
      %v419 = vsel %vm417, %v407, 0.0
      %v420 = vsel %vm418, %v408, 0.0
      %v421 = vadd.f32 %v419, 0.0
      %v422 = vadd.f32 %v420, 0.0
      %v423 = vlaneseq
      %v424 = vshrl.u32 %v423, 7
      %v425 = vsub.s32 1, %v424
      %v426 = vrot.slane %v390, %v425
      %v427 = vmul.f32 %v386, %v426
      %v428 = vmul.f32 %v387, %v426
      %v429 = vadd.f32 %v421, %v427
      %v430 = vadd.f32 %v422, %v428
      %vm431 = vcmask 1046528
      %v432 = vrot.slane %v386, 1
      %v433 = vrot.slane %v387, 1
      %v434 = vsel %vm431, %v432, %v433
      %v438 = vsel %vm431, %v433, %v432
      %vm439 = vcmp.lt.s32.totalorder %v388, 15
      %vm440 = vcmp.lt.s32.totalorder %v389, 15
      %v441 = vlaneseq
      %v442 = vshrl.u32 %v441, 7
      %v443 = vsub.s32 2, %v442
      %v444 = vrot.slane %v390, %v443
      %v445 = vmul.f32 %v434, %v444
      %v446 = vmul.f32 %v438, %v444
      %v447 = vsel %vm439, 1, 0
      %v448 = vsel %vm440, 1, 0
      %449 = vset.pattern.permute.xlu0 0
      %450 = vperm.xlu0 %449, %v447
      %v451 = vpop.permute.xlu0 %450
      %452 = vset.pattern.permute.xlu0 0
      %453 = vperm.xlu0 %452, %v448
      %v454 = vpop.permute.xlu0 %453
      %vm455 = vcmp.eq.s32.totalorder %v451, 1
      %vm456 = vcmp.eq.s32.totalorder %v454, 1
      %v457 = vsel %vm455, %v445, 0.0
      %v458 = vsel %vm456, %v446, 0.0
      %v459 = vadd.f32 %v429, %v457
      %v460 = vadd.f32 %v430, %v458
      %v461 = vld [vmem:[%s3] sm:$0x1]
      %v463 = vlaneseq
      %v464 = vshrl.u32 %v463, 7
      %v465 = vsub.s32 0, %v464
      %v466 = vrot.slane %v461, %v465
      %v468 = vmul.f32 %v459, %v466
      %v469 = vmul.f32 %v460, %v466
      %v470 = vld [vmem:[%s4] sm:$0x1]
      %v472 = vlaneseq
      %v473 = vshrl.u32 %v472, 7
      %v474 = vsub.s32 0, %v473
      %v475 = vrot.slane %v470, %v474
      %v477 = vadd.f32 %v468, %v475
      %v478 = vadd.f32 %v469, %v475
      %v479 = vmin.f32 %v477, 0.0
      %v480 = vmin.f32 %v478, 0.0
      %v481 = vmul.f32 %v479, 1.442695
      %v482 = vpow.pop %v481
      %v483 = vmul.f32 %v480, 1.442695
      %v484 = vpow.pop %v483
      %vm485 = vcmp.gt.f32.partialorder %v477, 0.0
      %vm486 = vcmp.gt.f32.partialorder %v478, 0.0
      %v487 = vsub.f32 %v482, 1.0
      %v488 = vsub.f32 %v484, 1.0
      %v489 = vsel %vm485, %v477, %v487
      %v490 = vsel %vm486, %v478, %v488
      %491 = vrot.lane.b32.xlu0 %v386, 4
      %v492 = vpop.permute.xlu0 %491
      %493 = vrot.lane.b32.xlu0 %v387, 4
      %v494 = vpop.permute.xlu0 %493
      %vm497 = vcmask 31744
      %v498 = vsel %vm497, %v489, %v492
      %v499 = vsel %vm497, %v490, %v494
      %v500 = vpack.c.bf16 %v499, %v498
      %v501 = vld [vmem:[%s5] sm:$0xff]
      %v503 = vunpack.c.l.b16 %v501
      %v504 = vunpack.c.h.b16 %v501
      %v505 = vpack.c.b16 %v503, %v503
      %v506 = vpack.c.b16 %v504, %v504
      %vm507 = vcmask 64512
      %v509 = vsel %vm507, %v500, 0
      %vm511 = vcmask 1043456
      %v513 = vsel %vm511, %v505, 0
      %v516 = vsel %vm511, %v506, 0
      %518 = vmatprep.subr.bf16.mxu0 0
      %519 = vmatpush1.bf16.msra.mxu0 0
      %520 = vmatprep.subr.bf16.mxu0 0
      %521 = vmatpush1.bf16.msra.mxu0 0
      %522 = vmatprep.subr.bf16.mxu0 0
      %523 = vmatpush1.bf16.msra.mxu0 0
      %524 = vmatprep.subr.bf16.mxu0 0
      %525 = vmatpush1.bf16.msra.mxu0 0
      %526 = vmatprep.subr.bf16.mxu0 0
      %527 = vmatpush1.bf16.msra.mxu0 0
      %528 = vmatprep.subr.bf16.mxu0 0
      %529 = vmatpush1.bf16.msra.mxu0 0
      %530 = vmatprep.subr.bf16.mxu0 0
      %531 = vmatpush1.bf16.msra.mxu0 0
      %532 = vmatprep.subr.bf16.mxu0 %v516
      %533 = vmatpush1.bf16.msra.mxu0 %v513
      %534 = vmatprep.subr.bf16.mxu0 0
      %535 = vmatpush2.bf16.msra.mxu0 0
      %536 = vmatprep.subr.bf16.mxu0 0
      %537 = vmatpush2.bf16.msra.mxu0 0
      %538 = vmatprep.subr.bf16.mxu0 0
      %539 = vmatpush2.bf16.msra.mxu0 0
      %540 = vmatprep.subr.bf16.mxu0 0
      %541 = vmatpush2.bf16.msra.mxu0 0
      %542 = vmatprep.subr.bf16.mxu0 0
      %543 = vmatpush2.bf16.msra.mxu0 0
      %544 = vmatprep.subr.bf16.mxu0 0
      %545 = vmatpush2.bf16.msra.mxu0 0
      %546 = vmatprep.subr.bf16.mxu0 0
      %547 = vmatpush2.bf16.msra.mxu0 0
      %548 = vmatprep.subr.bf16.mxu0 0
      %549 = vmatpush2.bf16.msra.mxu0 0
      %550 = vmatprep.mubr.bf16.mxu0 0
      %551 = vmatmul.mubr.bf16.gmra.mxu0 %v509
      %v552 = vpop.f32.mrf.mxu0
      %v553 = vadd.f32 0.0, %v552
      %v554 = vpop.f32.mrf.mxu0
      %v555 = vadd.f32 0.0, %v554
      %v556 = vpop.f32.mrf.mxu0
      %v557 = vadd.f32 0.0, %v556
      %v558 = vpop.f32.mrf.mxu0
      %v559 = vadd.f32 0.0, %v558
      %560 = vdwg.mxu0
      %v561 = vld [vmem:[%s6] sm:$0x1]
      %v563 = vlaneseq
      %v564 = vshrl.u32 %v563, 7
      %v565 = vsub.s32 0, %v564
      %v566 = vrot.slane %v561, %v565
      %v568 = vmul.f32 %v553, %v566
      %v569 = vmul.f32 %v557, %v566
      %v570 = vld [vmem:[%s7] sm:$0x1]
      %v572 = vlaneseq
      %v573 = vshrl.u32 %v572, 7
      %v574 = vsub.s32 0, %v573
      %v575 = vrot.slane %v570, %v574
      %v577 = vadd.f32 %v568, %v575
      %v578 = vadd.f32 %v569, %v575
      %v579 = vmin.f32 %v577, 0.0
      %v580 = vmin.f32 %v578, 0.0
      %v581 = vmul.f32 %v579, 1.442695
      %v582 = vpow.pop %v581
      %v583 = vmul.f32 %v580, 1.442695
      %v584 = vpow.pop %v583
      %vm585 = vcmp.gt.f32.partialorder %v577, 0.0
      %vm586 = vcmp.gt.f32.partialorder %v578, 0.0
      %v587 = vsub.f32 %v582, 1.0
      %v588 = vsub.f32 %v584, 1.0
      %v589 = vsel %vm585, %v577, %v587
      %v590 = vsel %vm586, %v578, %v588
      %v591 = vld [vmem:[%s8] sm:$0x1]
      %v593 = vlaneseq
      %v594 = vshrl.u32 %v593, 7
      %v595 = vsub.s32 0, %v594
      %v596 = vrot.slane %v591, %v595
      %v598 = vmul.f32 %v555, %v596
      %v599 = vmul.f32 %v559, %v596
      %v600 = vadd.f32 %v589, %v598
      %v601 = vadd.f32 %v590, %v599
      %v602 = vld [vmem:[%s9] sm:$0x1]
      %v604 = vlaneseq
      %v605 = vshrl.u32 %v604, 7
      %v606 = vsub.s32 0, %v605
      %v607 = vrot.slane %v602, %v606
      %v609 = vadd.f32 %v600, %v607
      %v610 = vadd.f32 %v601, %v607
      %v611 = vmin.f32 %v609, 0.0
      %v612 = vmin.f32 %v610, 0.0
      %v613 = vmul.f32 %v611, 1.442695
      %v614 = vpow.pop %v613
      %v615 = vmul.f32 %v612, 1.442695
      %v616 = vpow.pop %v615
      %vm617 = vcmp.gt.f32.partialorder %v609, 0.0
      %vm618 = vcmp.gt.f32.partialorder %v610, 0.0
      %v619 = vsub.f32 %v614, 1.0
      %v620 = vsub.f32 %v616, 1.0
      %v621 = vsel %vm617, %v609, %v619
      %v622 = vsel %vm618, %v610, %v620
      %623 = vst.msk [vmem:[%s383] sm:$0xff] %vm507, %v621
      %624 = vst.msk [vmem:[%s383 + $0x8] sm:$0xff] %vm507, %v622
      %s625 = smul.u32 2, %s21
      %p626 = scmp.lt.s32.totalorder %s625, 3
      %s627 = scalar_select %p626, %s625, 3
      %s628 = smul.addr %s627, 8
      %s629 = scalar_lea.vmem %s10, %s628
      // Predicated region
      $region61: #{tpu_custom_call.1} parent=59 // pred_check
        %p630 = pneg %p259
      $region62: #{tpu_custom_call.1} parent=59 // pred_check_branch
        %632 = sbr.rel (%p630) target = $region64
      $region63: #{tpu_custom_call.1} parent=59 // pred_region
        %s633 = smul.u32 2, %s21
      $region64: #{tpu_custom_call.1} parent=59 // pred_fallthru
        _
    $region60: #{tpu_custom_call.1} parent=5 // pred_fallthru
      _
    %p634 = scmp.le.s32.totalorder 2, %s16
    // Predicated region
    $region65: #{tpu_custom_call.1} parent=5 // pred_check
      %p635 = pneg %p634
    $region66: #{tpu_custom_call.1} parent=5 // pred_check_branch
      %637 = sbr.rel (%p635) target = $region68
    $region67: #{tpu_custom_call.1} parent=5 // pred_region
      %s638 = ssub.s32 %s16, 2
      // Predicated region
      $region69: #{tpu_custom_call.1} parent=67 // pred_check
        %p639 = pneg %p265
      $region70: #{tpu_custom_call.1} parent=67 // pred_check_branch
        %641 = sbr.rel (%p639) target = $region72
      $region71: #{tpu_custom_call.1} parent=67 // pred_region
        %s642 = smul.u32 2, %s22
        %p643 = scmp.lt.s32.totalorder %s642, 3
        %s644 = scalar_select %p643, %s642, 3
        %s645 = smul.addr %s644, 8
        %s646 = scalar_lea.vmem %s10, %s645
      $region72: #{tpu_custom_call.1} parent=67 // pred_fallthru
        _
    $region68: #{tpu_custom_call.1} parent=5 // pred_fallthru
      _
  $region6: #{tpu_custom_call.1} parent=0 // loop_footer
    %s20 = sadd.s32 1, %s16
  $region7: #{tpu_custom_call.1} parent=0 // loop_footer_branch
    %15 = sbr.rel target = $region3
  $region8: #{tpu_custom_call.1} parent=0 // loop_exit
    _

// kernel: tpu_custom_call.1
$region0: #{tpu_custom_call.1}
  #allocation0 [shape = 'u32[]', space=smem, size = 0x4, offset = 0x4, fixed_abs, tag = 'smem constant byte address 0x4 - core index']
  #allocation1 [shape = 'u32[144,128]{1,0:T(1,128)}', space=vmem, size = 0x12000, scoped, tag = 'internal scratch']
  %s0 = inlined_call_operand.vmem [shape: f32[32,4], index: 0, kind: input, shape index: {}]
  %s1 = inlined_call_operand.vmem [shape: s32[32,1], index: 1, kind: input, shape index: {}]
  %s2 = inlined_call_operand.vmem [shape: f32[3,4], index: 2, kind: input, shape index: {}]
  %s3 = inlined_call_operand.vmem [shape: f32[1,4], index: 3, kind: input, shape index: {}]
  %s4 = inlined_call_operand.vmem [shape: f32[1,4], index: 4, kind: input, shape index: {}]
  %s5 = inlined_call_operand.vmem [shape: bf16[8,136], index: 5, kind: input, shape index: {}]
  %s6 = inlined_call_operand.vmem [shape: f32[1,8], index: 6, kind: input, shape index: {}]
  %s7 = inlined_call_operand.vmem [shape: f32[1,8], index: 7, kind: input, shape index: {}]
  %s8 = inlined_call_operand.vmem [shape: f32[1,8], index: 8, kind: input, shape index: {}]
  %s9 = inlined_call_operand.vmem [shape: f32[1,8], index: 9, kind: input, shape index: {}]
  %s10 = inlined_call_operand.vmem [shape: f32[32,8], index: 10, kind: output, shape index: {}]
  %s11 = sld [smem:[#allocation0]]
  $region73: #{tpu_custom_call.1} parent=0
    _
  %s13 = ssub.s32 1, %s11
  %s14 = scalar_select 0, %s13, %s11
  loop: start=0, step=1, limit=4
  $region2: #{tpu_custom_call.1} parent=0 // loop_pre_header
    _
  $region3: #{tpu_custom_call.1} parent=0 // loop_header
    %s16 = sphi 0, %s20
    %p17 = scmp.ge.s32.totalorder %s16, 4
    %s26 = sphi 0, %s28
    %s29 = sphi 0, %s26
    %s30 = sphi 0, %s29
    %s46 = sphi 0, %s30
    %s52 = sphi 0, %s54
    %s55 = sphi 0, %s52
    %s56 = sphi 0, %s55
    %s72 = sphi 0, %s56
    %s76 = sphi 0, %s76
    %s78 = sphi 0, %s76
    %s79 = sphi 0, %s78
    %s93 = sphi 0, %s79
    %s97 = sphi 0, %s97
    %s99 = sphi 0, %s97
    %s100 = sphi 0, %s99
    %s114 = sphi 0, %s100
    %s118 = sphi 0, %s118
    %s120 = sphi 0, %s118
    %s121 = sphi 0, %s120
    %s135 = sphi 0, %s121
    %s139 = sphi 0, %s139
    %s141 = sphi 0, %s139
    %s142 = sphi 0, %s141
    %s156 = sphi 0, %s142
    %s160 = sphi 0, %s160
    %s162 = sphi 0, %s160
    %s163 = sphi 0, %s162
    %s177 = sphi 0, %s163
    %s181 = sphi 0, %s181
    %s183 = sphi 0, %s181
    %s184 = sphi 0, %s183
    %s198 = sphi 0, %s184
    %s202 = sphi 0, %s202
    %s204 = sphi 0, %s202
    %s205 = sphi 0, %s204
    %s219 = sphi 0, %s205
    %s223 = sphi 0, %s223
    %s225 = sphi 0, %s223
    %s226 = sphi 0, %s225
    %s240 = sphi 0, %s226
    %s246 = sphi 0, %s248
    %s249 = sphi 0, %s246
    %s250 = sphi 0, %s249
    %s266 = sphi 0, %s250
  $region4: #{tpu_custom_call.1} parent=0 // loop_header_branch
    %19 = sbr.rel (%p17) target = $region8
  $region5: #{tpu_custom_call.1} parent=0 // loop_body
    %s21 = ssub.s32 %s16, 1
    %s22 = ssub.s32 %s16, 2
    %s23 = sadd.s32 %s16, 1
    %s24 = ssub.s32 %s16, %s23
    %p25 = scmp.eq.s32.totalorder %s24, 0
    %s27 = sadd.s32 %s26, 1
    %s28 = scalar_select %p25, %s26, %s27
    %p31 = pneg %p25
    %p32 = scmp.eq.s32.totalorder %s16, 1
    %p33 = por %p31, %p32
    %p34 = scmp.ne.s32.totalorder %s26, %s29
    %p35 = scmp.eq.s32.totalorder %s16, 0
    %p36 = por %p34, %p35
    %p37 = scmp.ne.s32.totalorder %s26, %s29
    %p38 = scmp.eq.s32.totalorder %s21, 1
    %p39 = por %p37, %p38
    %p40 = scmp.ne.s32.totalorder %s29, %s30
    %p41 = scmp.eq.s32.totalorder %s21, 0
    %p42 = por %p40, %p41
    %p43 = scmp.ne.s32.totalorder %s29, %s30
    %p44 = scmp.eq.s32.totalorder %s22, 1
    %p45 = por %p43, %p44
    %p47 = scmp.ne.s32.totalorder %s30, %s46
    %p48 = scmp.eq.s32.totalorder %s22, 0
    %p49 = por %p47, %p48
    %s50 = ssub.s32 %s16, %s23
    %p51 = scmp.eq.s32.totalorder %s50, 0
    %s53 = sadd.s32 %s52, 1
    %s54 = scalar_select %p51, %s52, %s53
    %p57 = pneg %p51
    %p58 = scmp.eq.s32.totalorder %s16, 1
    %p59 = por %p57, %p58
    %p60 = scmp.ne.s32.totalorder %s52, %s55
    %p61 = scmp.eq.s32.totalorder %s16, 0
    %p62 = por %p60, %p61
    %p63 = scmp.ne.s32.totalorder %s52, %s55
    %p64 = scmp.eq.s32.totalorder %s21, 1
    %p65 = por %p63, %p64
    %p66 = scmp.ne.s32.totalorder %s55, %s56
    %p67 = scmp.eq.s32.totalorder %s21, 0
    %p68 = por %p66, %p67
    %p69 = scmp.ne.s32.totalorder %s55, %s56
    %p70 = scmp.eq.s32.totalorder %s22, 1
    %p71 = por %p69, %p70
    %p73 = scmp.ne.s32.totalorder %s56, %s72
    %p74 = scmp.eq.s32.totalorder %s22, 0
    %p75 = por %p73, %p74
    %s77 = sadd.s32 %s76, 1
    %p80 = scmp.eq.s32.totalorder %s16, 1
    %p81 = scmp.ne.s32.totalorder %s76, %s78
    %p82 = scmp.eq.s32.totalorder %s16, 0
    %p83 = por %p81, %p82
    %p84 = scmp.ne.s32.totalorder %s76, %s78
    %p85 = scmp.eq.s32.totalorder %s21, 1
    %p86 = por %p84, %p85
    %p87 = scmp.ne.s32.totalorder %s78, %s79
    %p88 = scmp.eq.s32.totalorder %s21, 0
    %p89 = por %p87, %p88
    %p90 = scmp.ne.s32.totalorder %s78, %s79
    %p91 = scmp.eq.s32.totalorder %s22, 1
    %p92 = por %p90, %p91
    %p94 = scmp.ne.s32.totalorder %s79, %s93
    %p95 = scmp.eq.s32.totalorder %s22, 0
    %p96 = por %p94, %p95
    %s98 = sadd.s32 %s97, 1
    %p101 = scmp.eq.s32.totalorder %s16, 1
    %p102 = scmp.ne.s32.totalorder %s97, %s99
    %p103 = scmp.eq.s32.totalorder %s16, 0
    %p104 = por %p102, %p103
    %p105 = scmp.ne.s32.totalorder %s97, %s99
    %p106 = scmp.eq.s32.totalorder %s21, 1
    %p107 = por %p105, %p106
    %p108 = scmp.ne.s32.totalorder %s99, %s100
    %p109 = scmp.eq.s32.totalorder %s21, 0
    %p110 = por %p108, %p109
    %p111 = scmp.ne.s32.totalorder %s99, %s100
    %p112 = scmp.eq.s32.totalorder %s22, 1
    %p113 = por %p111, %p112
    %p115 = scmp.ne.s32.totalorder %s100, %s114
    %p116 = scmp.eq.s32.totalorder %s22, 0
    %p117 = por %p115, %p116
    %s119 = sadd.s32 %s118, 1
    %p122 = scmp.eq.s32.totalorder %s16, 1
    %p123 = scmp.ne.s32.totalorder %s118, %s120
    %p124 = scmp.eq.s32.totalorder %s16, 0
    %p125 = por %p123, %p124
    %p126 = scmp.ne.s32.totalorder %s118, %s120
    %p127 = scmp.eq.s32.totalorder %s21, 1
    %p128 = por %p126, %p127
    %p129 = scmp.ne.s32.totalorder %s120, %s121
    %p130 = scmp.eq.s32.totalorder %s21, 0
    %p131 = por %p129, %p130
    %p132 = scmp.ne.s32.totalorder %s120, %s121
    %p133 = scmp.eq.s32.totalorder %s22, 1
    %p134 = por %p132, %p133
    %p136 = scmp.ne.s32.totalorder %s121, %s135
    %p137 = scmp.eq.s32.totalorder %s22, 0
    %p138 = por %p136, %p137
    %s140 = sadd.s32 %s139, 1
    %p143 = scmp.eq.s32.totalorder %s16, 1
    %p144 = scmp.ne.s32.totalorder %s139, %s141
    %p145 = scmp.eq.s32.totalorder %s16, 0
    %p146 = por %p144, %p145
    %p147 = scmp.ne.s32.totalorder %s139, %s141
    %p148 = scmp.eq.s32.totalorder %s21, 1
    %p149 = por %p147, %p148
    %p150 = scmp.ne.s32.totalorder %s141, %s142
    %p151 = scmp.eq.s32.totalorder %s21, 0
    %p152 = por %p150, %p151
    %p153 = scmp.ne.s32.totalorder %s141, %s142
    %p154 = scmp.eq.s32.totalorder %s22, 1
    %p155 = por %p153, %p154
    %p157 = scmp.ne.s32.totalorder %s142, %s156
    %p158 = scmp.eq.s32.totalorder %s22, 0
    %p159 = por %p157, %p158
    %s161 = sadd.s32 %s160, 1
    %p164 = scmp.eq.s32.totalorder %s16, 1
    %p165 = scmp.ne.s32.totalorder %s160, %s162
    %p166 = scmp.eq.s32.totalorder %s16, 0
    %p167 = por %p165, %p166
    %p168 = scmp.ne.s32.totalorder %s160, %s162
    %p169 = scmp.eq.s32.totalorder %s21, 1
    %p170 = por %p168, %p169
    %p171 = scmp.ne.s32.totalorder %s162, %s163
    %p172 = scmp.eq.s32.totalorder %s21, 0
    %p173 = por %p171, %p172
    %p174 = scmp.ne.s32.totalorder %s162, %s163
    %p175 = scmp.eq.s32.totalorder %s22, 1
    %p176 = por %p174, %p175
    %p178 = scmp.ne.s32.totalorder %s163, %s177
    %p179 = scmp.eq.s32.totalorder %s22, 0
    %p180 = por %p178, %p179
    %s182 = sadd.s32 %s181, 1
    %p185 = scmp.eq.s32.totalorder %s16, 1
    %p186 = scmp.ne.s32.totalorder %s181, %s183
    %p187 = scmp.eq.s32.totalorder %s16, 0
    %p188 = por %p186, %p187
    %p189 = scmp.ne.s32.totalorder %s181, %s183
    %p190 = scmp.eq.s32.totalorder %s21, 1
    %p191 = por %p189, %p190
    %p192 = scmp.ne.s32.totalorder %s183, %s184
    %p193 = scmp.eq.s32.totalorder %s21, 0
    %p194 = por %p192, %p193
    %p195 = scmp.ne.s32.totalorder %s183, %s184
    %p196 = scmp.eq.s32.totalorder %s22, 1
    %p197 = por %p195, %p196
    %p199 = scmp.ne.s32.totalorder %s184, %s198
    %p200 = scmp.eq.s32.totalorder %s22, 0
    %p201 = por %p199, %p200
    %s203 = sadd.s32 %s202, 1
    %p206 = scmp.eq.s32.totalorder %s16, 1
    %p207 = scmp.ne.s32.totalorder %s202, %s204
    %p208 = scmp.eq.s32.totalorder %s16, 0
    %p209 = por %p207, %p208
    %p210 = scmp.ne.s32.totalorder %s202, %s204
    %p211 = scmp.eq.s32.totalorder %s21, 1
    %p212 = por %p210, %p211
    %p213 = scmp.ne.s32.totalorder %s204, %s205
    %p214 = scmp.eq.s32.totalorder %s21, 0
    %p215 = por %p213, %p214
    %p216 = scmp.ne.s32.totalorder %s204, %s205
    %p217 = scmp.eq.s32.totalorder %s22, 1
    %p218 = por %p216, %p217
    %p220 = scmp.ne.s32.totalorder %s205, %s219
    %p221 = scmp.eq.s32.totalorder %s22, 0
    %p222 = por %p220, %p221
    %s224 = sadd.s32 %s223, 1
    %p227 = scmp.eq.s32.totalorder %s16, 1
    %p228 = scmp.ne.s32.totalorder %s223, %s225
    %p229 = scmp.eq.s32.totalorder %s16, 0
    %p230 = por %p228, %p229
    %p231 = scmp.ne.s32.totalorder %s223, %s225
    %p232 = scmp.eq.s32.totalorder %s21, 1
    %p233 = por %p231, %p232
    %p234 = scmp.ne.s32.totalorder %s225, %s226
    %p235 = scmp.eq.s32.totalorder %s21, 0
    %p236 = por %p234, %p235
    %p237 = scmp.ne.s32.totalorder %s225, %s226
    %p238 = scmp.eq.s32.totalorder %s22, 1
    %p239 = por %p237, %p238
    %p241 = scmp.ne.s32.totalorder %s226, %s240
    %p242 = scmp.eq.s32.totalorder %s22, 0
    %p243 = por %p241, %p242
    %s244 = ssub.s32 %s16, %s23
    %p245 = scmp.eq.s32.totalorder %s244, 0
    %s247 = sadd.s32 %s246, 1
    %s248 = scalar_select %p245, %s246, %s247
    %p251 = pneg %p245
    %p252 = scmp.eq.s32.totalorder %s16, 1
    %p253 = por %p251, %p252
    %p254 = scmp.ne.s32.totalorder %s246, %s249
    %p255 = scmp.eq.s32.totalorder %s16, 0
    %p256 = por %p254, %p255
    %p257 = scmp.ne.s32.totalorder %s246, %s249
    %p258 = scmp.eq.s32.totalorder %s21, 1
    %p259 = por %p257, %p258
    %p260 = scmp.ne.s32.totalorder %s249, %s250
    %p261 = scmp.eq.s32.totalorder %s21, 0
    %p262 = por %p260, %p261
    %p263 = scmp.ne.s32.totalorder %s249, %s250
    %p264 = scmp.eq.s32.totalorder %s22, 1
    %p265 = por %p263, %p264
    %p267 = scmp.ne.s32.totalorder %s250, %s266
    %p268 = scmp.eq.s32.totalorder %s22, 0
    %p269 = por %p267, %p268
    %p270 = scmp.le.s32.totalorder 1, %s16
    %p271 = scmp.lt.s32.totalorder %s16, 3
    %p272 = pnand %p270, %p271
    %p273 = pneg %p272
    // Predicated region
    $region9: #{tpu_custom_call.1} parent=5 // pred_check
      _
    $region10: #{tpu_custom_call.1} parent=5 // pred_check_branch
      %275 = sbr.rel (%p272) target = $region12
    $region11: #{tpu_custom_call.1} parent=5 // pred_region
      %s276 = ssub.s32 %s16, 1
      // Predicated region
      $region13: #{tpu_custom_call.1} parent=11 // pred_check
        %p277 = pneg %p89
      $region14: #{tpu_custom_call.1} parent=11 // pred_check_branch
        %279 = sbr.rel (%p277) target = $region16
      $region15: #{tpu_custom_call.1} parent=11 // pred_region
        _
      $region16: #{tpu_custom_call.1} parent=11 // pred_fallthru
        _
      // Predicated region
      $region17: #{tpu_custom_call.1} parent=11 // pred_check
        %p280 = pneg %p110
      $region18: #{tpu_custom_call.1} parent=11 // pred_check_branch
        %282 = sbr.rel (%p280) target = $region20
      $region19: #{tpu_custom_call.1} parent=11 // pred_region
        _
      $region20: #{tpu_custom_call.1} parent=11 // pred_fallthru
        _
      // Predicated region
      $region21: #{tpu_custom_call.1} parent=11 // pred_check
        %p283 = pneg %p131
      $region22: #{tpu_custom_call.1} parent=11 // pred_check_branch
        %285 = sbr.rel (%p283) target = $region24
      $region23: #{tpu_custom_call.1} parent=11 // pred_region
        _
      $region24: #{tpu_custom_call.1} parent=11 // pred_fallthru
        _
      // Predicated region
      $region25: #{tpu_custom_call.1} parent=11 // pred_check
        %p286 = pneg %p152
      $region26: #{tpu_custom_call.1} parent=11 // pred_check_branch
        %288 = sbr.rel (%p286) target = $region28
      $region27: #{tpu_custom_call.1} parent=11 // pred_region
        _
      $region28: #{tpu_custom_call.1} parent=11 // pred_fallthru
        _
      // Predicated region
      $region29: #{tpu_custom_call.1} parent=11 // pred_check
        %p289 = pneg %p173
      $region30: #{tpu_custom_call.1} parent=11 // pred_check_branch
        %291 = sbr.rel (%p289) target = $region32
      $region31: #{tpu_custom_call.1} parent=11 // pred_region
        _
      $region32: #{tpu_custom_call.1} parent=11 // pred_fallthru
        _
      // Predicated region
      $region33: #{tpu_custom_call.1} parent=11 // pred_check
        %p292 = pneg %p194
      $region34: #{tpu_custom_call.1} parent=11 // pred_check_branch
        %294 = sbr.rel (%p292) target = $region36
      $region35: #{tpu_custom_call.1} parent=11 // pred_region
        _
      $region36: #{tpu_custom_call.1} parent=11 // pred_fallthru
        _
      // Predicated region
      $region37: #{tpu_custom_call.1} parent=11 // pred_check
        %p295 = pneg %p215
      $region38: #{tpu_custom_call.1} parent=11 // pred_check_branch
        %297 = sbr.rel (%p295) target = $region40
      $region39: #{tpu_custom_call.1} parent=11 // pred_region
        _
      $region40: #{tpu_custom_call.1} parent=11 // pred_fallthru
        _
      // Predicated region
      $region41: #{tpu_custom_call.1} parent=11 // pred_check
        %p298 = pneg %p236
      $region42: #{tpu_custom_call.1} parent=11 // pred_check_branch
        %300 = sbr.rel (%p298) target = $region44
      $region43: #{tpu_custom_call.1} parent=11 // pred_region
        _
      $region44: #{tpu_custom_call.1} parent=11 // pred_fallthru
        _
    $region12: #{tpu_custom_call.1} parent=5 // pred_fallthru
      _
    %p301 = scmp.lt.s32.totalorder %s16, 2
    // Predicated region
    $region45: #{tpu_custom_call.1} parent=5 // pred_check
      %p302 = pneg %p301
    $region46: #{tpu_custom_call.1} parent=5 // pred_check_branch
      %304 = sbr.rel (%p302) target = $region48
    $region47: #{tpu_custom_call.1} parent=5 // pred_region
      // Predicated region
      $region49: #{tpu_custom_call.1} parent=47 // pred_check
        %p305 = pneg %p36
      $region50: #{tpu_custom_call.1} parent=47 // pred_check_branch
        %307 = sbr.rel (%p305) target = $region52
      $region51: #{tpu_custom_call.1} parent=47 // pred_region
        %s308 = smul.u32 2, %s16
        %p309 = scmp.lt.s32.totalorder %s308, 3
        %s310 = scalar_select %p309, %s308, 3
        %s311 = smul.addr %s310, 8
        %s312 = scalar_lea.vmem %s0, %s311
        %s313 = smul.u32 2, %s16
      $region52: #{tpu_custom_call.1} parent=47 // pred_fallthru
        _
      // Predicated region
      $region53: #{tpu_custom_call.1} parent=47 // pred_check
        %p314 = pneg %p62
      $region54: #{tpu_custom_call.1} parent=47 // pred_check_branch
        %316 = sbr.rel (%p314) target = $region56
      $region55: #{tpu_custom_call.1} parent=47 // pred_region
        %s317 = smul.u32 2, %s16
        %p318 = scmp.lt.s32.totalorder %s317, 3
        %s319 = scalar_select %p318, %s317, 3
        %s320 = smul.addr %s319, 8
        %s321 = scalar_lea.vmem %s1, %s320
        %s322 = smul.u32 2, %s16
      $region56: #{tpu_custom_call.1} parent=47 // pred_fallthru
        _
    $region48: #{tpu_custom_call.1} parent=5 // pred_fallthru
      _
    %p323 = scmp.le.s32.totalorder 1, %s16
    %p324 = scmp.lt.s32.totalorder %s16, 3
    %p325 = pnand %p323, %p324
    %p326 = pneg %p325
    // Predicated region
    $region57: #{tpu_custom_call.1} parent=5 // pred_check
      _
    $region58: #{tpu_custom_call.1} parent=5 // pred_check_branch
      %328 = sbr.rel (%p325) target = $region60
    $region59: #{tpu_custom_call.1} parent=5 // pred_region
      %s329 = ssub.s32 %s16, 1
      %s330 = smul.u32 2, %s21
      %p331 = scmp.lt.s32.totalorder %s330, 3
      %s332 = scalar_select %p331, %s330, 3
      %s333 = smul.addr %s332, 8
      %s334 = scalar_lea.vmem %s0, %s333
      %p335 = pneg %p42
      %p336 = pneg %p39
      %s337 = smul.u32 2, %s21
      %p338 = scmp.lt.s32.totalorder %s337, 3
      %s339 = scalar_select %p338, %s337, 3
      %s340 = smul.addr %s339, 8
      %s341 = scalar_lea.vmem %s1, %s340
      %p342 = pneg %p68
      %p343 = pneg %p65
      %p344 = pneg %p89
      %p345 = pneg %p86
      %p346 = pneg %p110
      %p347 = pneg %p107
      %p348 = pneg %p131
      %p349 = pneg %p128
      %p350 = pneg %p152
      %p351 = pneg %p149
      %p352 = pneg %p173
      %p353 = pneg %p170
      %p354 = pneg %p194
      %p355 = pneg %p191
      %p356 = pneg %p215
      %p357 = pneg %p212
      %p358 = pneg %p236
      %p359 = pneg %p233
      %p360 = pneg %p262
      %p361 = pneg %p259
      %s362 = smul.u32 2, %s21
      %p363 = scmp.lt.s32.totalorder %s362, 3
      %s364 = scalar_select %p363, %s362, 3
      %s365 = smul.addr %s364, 8
      %s366 = scalar_lea.vmem %s10, %s365
      %s367 = smul.u32 2, %s21
      %p368 = scmp.lt.s32.totalorder %s367, 3
      %s369 = scalar_select %p368, %s367, 3
      %s370 = smul.addr %s369, 8
      %s371 = scalar_lea.vmem %s0, %s370
      %s372 = smul.u32 2, %s21
      %s373 = smul.u32 2, %s21
      %p374 = scmp.lt.s32.totalorder %s373, 3
      %s375 = scalar_select %p374, %s373, 3
      %s376 = smul.addr %s375, 8
      %s377 = scalar_lea.vmem %s1, %s376
      %s378 = smul.u32 2, %s21
      %s379 = smul.u32 2, %s21
      %p380 = scmp.lt.s32.totalorder %s379, 3
      %s381 = scalar_select %p380, %s379, 3
      %s382 = smul.addr %s381, 8
      %s383 = scalar_lea.vmem %s10, %s382
      %s384 = smul.u32 2, %s21
      %v386 = vld [vmem:[%s371] sm:$0xff]
      %v387 = vld [vmem:[%s371 + $0x8] sm:$0xff]
      %v388 = vld [vmem:[%s377] sm:$0xff]
      %v389 = vld [vmem:[%s377 + $0x8] sm:$0xff]
      %v390 = vld [vmem:[%s2] sm:$0x7]
      %v392 = vrot.slane %v387, 7
      %vm395 = vcmask 1040384
      %v396 = vrot.slane %v386, 7
      %v397 = vsel %vm395, %v396, %v392
      %v400 = vsel %vm395, %v392, %v396
      %vm401 = vcmp.ge.s32.totalorder %v388, 1
      %vm402 = vcmp.ge.s32.totalorder %v389, 1
      %v403 = vlaneseq
      %v404 = vshrl.u32 %v403, 7
      %v405 = vsub.s32 0, %v404
      %v406 = vrot.slane %v390, %v405
      %v407 = vmul.f32 %v400, %v406
      %v408 = vmul.f32 %v397, %v406
      %v409 = vsel %vm401, 1, 0
      %v410 = vsel %vm402, 1, 0
      %411 = vset.pattern.permute.xlu0 0
      %412 = vperm.xlu0 %411, %v409
      %v413 = vpop.permute.xlu0 %412
      %414 = vset.pattern.permute.xlu0 0
      %415 = vperm.xlu0 %414, %v410
      %v416 = vpop.permute.xlu0 %415
      %vm417 = vcmp.eq.s32.totalorder %v413, 1
      %vm418 = vcmp.eq.s32.totalorder %v416, 1
      %v419 = vsel %vm417, %v407, 0.0
      %v420 = vsel %vm418, %v408, 0.0
      %v421 = vadd.f32 %v419, 0.0
      %v422 = vadd.f32 %v420, 0.0
      %v423 = vlaneseq
      %v424 = vshrl.u32 %v423, 7
      %v425 = vsub.s32 1, %v424
      %v426 = vrot.slane %v390, %v425
      %v427 = vmul.f32 %v386, %v426
      %v428 = vmul.f32 %v387, %v426
      %v429 = vadd.f32 %v421, %v427
      %v430 = vadd.f32 %v422, %v428
      %vm431 = vcmask 1046528
      %v432 = vrot.slane %v386, 1
      %v433 = vrot.slane %v387, 1
      %v434 = vsel %vm431, %v432, %v433
      %v438 = vsel %vm431, %v433, %v432
      %vm439 = vcmp.lt.s32.totalorder %v388, 15
      %vm440 = vcmp.lt.s32.totalorder %v389, 15
      %v441 = vlaneseq
      %v442 = vshrl.u32 %v441, 7
      %v443 = vsub.s32 2, %v442
      %v444 = vrot.slane %v390, %v443
      %v445 = vmul.f32 %v434, %v444
      %v446 = vmul.f32 %v438, %v444
      %v447 = vsel %vm439, 1, 0
      %v448 = vsel %vm440, 1, 0
      %449 = vset.pattern.permute.xlu0 0
      %450 = vperm.xlu0 %449, %v447
      %v451 = vpop.permute.xlu0 %450
      %452 = vset.pattern.permute.xlu0 0
      %453 = vperm.xlu0 %452, %v448
      %v454 = vpop.permute.xlu0 %453
      %vm455 = vcmp.eq.s32.totalorder %v451, 1
      %vm456 = vcmp.eq.s32.totalorder %v454, 1
      %v457 = vsel %vm455, %v445, 0.0
      %v458 = vsel %vm456, %v446, 0.0
      %v459 = vadd.f32 %v429, %v457
      %v460 = vadd.f32 %v430, %v458
      %v461 = vld [vmem:[%s3] sm:$0x1]
      %v463 = vlaneseq
      %v464 = vshrl.u32 %v463, 7
      %v465 = vsub.s32 0, %v464
      %v466 = vrot.slane %v461, %v465
      %v468 = vmul.f32 %v459, %v466
      %v469 = vmul.f32 %v460, %v466
      %v470 = vld [vmem:[%s4] sm:$0x1]
      %v472 = vlaneseq
      %v473 = vshrl.u32 %v472, 7
      %v474 = vsub.s32 0, %v473
      %v475 = vrot.slane %v470, %v474
      %v477 = vadd.f32 %v468, %v475
      %v478 = vadd.f32 %v469, %v475
      %v479 = vmin.f32 %v477, 0.0
      %v480 = vmin.f32 %v478, 0.0
      %v481 = vmul.f32 %v479, 1.442695
      %v482 = vpow.pop %v481
      %v483 = vmul.f32 %v480, 1.442695
      %v484 = vpow.pop %v483
      %vm485 = vcmp.gt.f32.partialorder %v477, 0.0
      %vm486 = vcmp.gt.f32.partialorder %v478, 0.0
      %v487 = vsub.f32 %v482, 1.0
      %v488 = vsub.f32 %v484, 1.0
      %v489 = vsel %vm485, %v477, %v487
      %v490 = vsel %vm486, %v478, %v488
      %491 = vrot.lane.b32.xlu0 %v386, 4
      %v492 = vpop.permute.xlu0 %491
      %493 = vrot.lane.b32.xlu0 %v387, 4
      %v494 = vpop.permute.xlu0 %493
      %vm497 = vcmask 31744
      %v498 = vsel %vm497, %v489, %v492
      %v499 = vsel %vm497, %v490, %v494
      %v500 = vpack.c.bf16 %v499, %v498
      %v501 = vld [vmem:[%s5] sm:$0xff]
      %v503 = vunpack.c.l.b16 %v501
      %v504 = vunpack.c.h.b16 %v501
      %v505 = vpack.c.b16 %v503, %v503
      %v506 = vpack.c.b16 %v504, %v504
      %vm507 = vcmask 64512
      %v509 = vsel %vm507, %v500, 0
      %vm511 = vcmask 1043456
      %v513 = vsel %vm511, %v505, 0
      %v516 = vsel %vm511, %v506, 0
      %518 = vmatprep.subr.bf16.mxu0 0
      %519 = vmatpush1.bf16.msra.mxu0 0
      %520 = vmatprep.subr.bf16.mxu0 0
      %521 = vmatpush1.bf16.msra.mxu0 0
      %522 = vmatprep.subr.bf16.mxu0 0
      %523 = vmatpush1.bf16.msra.mxu0 0
      %524 = vmatprep.subr.bf16.mxu0 0
      %525 = vmatpush1.bf16.msra.mxu0 0
      %526 = vmatprep.subr.bf16.mxu0 0
      %527 = vmatpush1.bf16.msra.mxu0 0
      %528 = vmatprep.subr.bf16.mxu0 0
      %529 = vmatpush1.bf16.msra.mxu0 0
      %530 = vmatprep.subr.bf16.mxu0 0
      %531 = vmatpush1.bf16.msra.mxu0 0
      %532 = vmatprep.subr.bf16.mxu0 %v516
      %533 = vmatpush1.bf16.msra.mxu0 %v513
      %534 = vmatprep.subr.bf16.mxu0 0
      %535 = vmatpush2.bf16.msra.mxu0 0
      %536 = vmatprep.subr.bf16.mxu0 0
      %537 = vmatpush2.bf16.msra.mxu0 0
      %538 = vmatprep.subr.bf16.mxu0 0
      %539 = vmatpush2.bf16.msra.mxu0 0
      %540 = vmatprep.subr.bf16.mxu0 0
      %541 = vmatpush2.bf16.msra.mxu0 0
      %542 = vmatprep.subr.bf16.mxu0 0
      %543 = vmatpush2.bf16.msra.mxu0 0
      %544 = vmatprep.subr.bf16.mxu0 0
      %545 = vmatpush2.bf16.msra.mxu0 0
      %546 = vmatprep.subr.bf16.mxu0 0
      %547 = vmatpush2.bf16.msra.mxu0 0
      %548 = vmatprep.subr.bf16.mxu0 0
      %549 = vmatpush2.bf16.msra.mxu0 0
      %550 = vmatprep.mubr.bf16.mxu0 0
      %551 = vmatmul.mubr.bf16.gmra.mxu0 %v509
      %v552 = vpop.f32.mrf.mxu0
      %v553 = vadd.f32 0.0, %v552
      %v554 = vpop.f32.mrf.mxu0
      %v555 = vadd.f32 0.0, %v554
      %v556 = vpop.f32.mrf.mxu0
      %v557 = vadd.f32 0.0, %v556
      %v558 = vpop.f32.mrf.mxu0
      %v559 = vadd.f32 0.0, %v558
      %560 = vdwg.mxu0
      %v561 = vld [vmem:[%s6] sm:$0x1]
      %v563 = vlaneseq
      %v564 = vshrl.u32 %v563, 7
      %v565 = vsub.s32 0, %v564
      %v566 = vrot.slane %v561, %v565
      %v568 = vmul.f32 %v553, %v566
      %v569 = vmul.f32 %v557, %v566
      %v570 = vld [vmem:[%s7] sm:$0x1]
      %v572 = vlaneseq
      %v573 = vshrl.u32 %v572, 7
      %v574 = vsub.s32 0, %v573
      %v575 = vrot.slane %v570, %v574
      %v577 = vadd.f32 %v568, %v575
      %v578 = vadd.f32 %v569, %v575
      %v579 = vmin.f32 %v577, 0.0
      %v580 = vmin.f32 %v578, 0.0
      %v581 = vmul.f32 %v579, 1.442695
      %v582 = vpow.pop %v581
      %v583 = vmul.f32 %v580, 1.442695
      %v584 = vpow.pop %v583
      %vm585 = vcmp.gt.f32.partialorder %v577, 0.0
      %vm586 = vcmp.gt.f32.partialorder %v578, 0.0
      %v587 = vsub.f32 %v582, 1.0
      %v588 = vsub.f32 %v584, 1.0
      %v589 = vsel %vm585, %v577, %v587
      %v590 = vsel %vm586, %v578, %v588
      %v591 = vld [vmem:[%s8] sm:$0x1]
      %v593 = vlaneseq
      %v594 = vshrl.u32 %v593, 7
      %v595 = vsub.s32 0, %v594
      %v596 = vrot.slane %v591, %v595
      %v598 = vmul.f32 %v555, %v596
      %v599 = vmul.f32 %v559, %v596
      %v600 = vadd.f32 %v589, %v598
      %v601 = vadd.f32 %v590, %v599
      %v602 = vld [vmem:[%s9] sm:$0x1]
      %v604 = vlaneseq
      %v605 = vshrl.u32 %v604, 7
      %v606 = vsub.s32 0, %v605
      %v607 = vrot.slane %v602, %v606
      %v609 = vadd.f32 %v600, %v607
      %v610 = vadd.f32 %v601, %v607
      %v611 = vmin.f32 %v609, 0.0
      %v612 = vmin.f32 %v610, 0.0
      %v613 = vmul.f32 %v611, 1.442695
      %v614 = vpow.pop %v613
      %v615 = vmul.f32 %v612, 1.442695
      %v616 = vpow.pop %v615
      %vm617 = vcmp.gt.f32.partialorder %v609, 0.0
      %vm618 = vcmp.gt.f32.partialorder %v610, 0.0
      %v619 = vsub.f32 %v614, 1.0
      %v620 = vsub.f32 %v616, 1.0
      %v621 = vsel %vm617, %v609, %v619
      %v622 = vsel %vm618, %v610, %v620
      %623 = vst.msk [vmem:[%s383] sm:$0xff] %vm507, %v621
      %624 = vst.msk [vmem:[%s383 + $0x8] sm:$0xff] %vm507, %v622
      %s625 = smul.u32 2, %s21
      %p626 = scmp.lt.s32.totalorder %s625, 3
      %s627 = scalar_select %p626, %s625, 3
      %s628 = smul.addr %s627, 8
      %s629 = scalar_lea.vmem %s10, %s628
      // Predicated region
      $region61: #{tpu_custom_call.1} parent=59 // pred_check
        %p630 = pneg %p259
      $region62: #{tpu_custom_call.1} parent=59 // pred_check_branch
        %632 = sbr.rel (%p630) target = $region64
      $region63: #{tpu_custom_call.1} parent=59 // pred_region
        %s633 = smul.u32 2, %s21
      $region64: #{tpu_custom_call.1} parent=59 // pred_fallthru
        _
    $region60: #{tpu_custom_call.1} parent=5 // pred_fallthru
      _
    %p634 = scmp.le.s32.totalorder 2, %s16
    // Predicated region
    $region65: #{tpu_custom_call.1} parent=5 // pred_check
      %p635 = pneg %p634
    $region66: #{tpu_custom_call.1} parent=5 // pred_check_branch
      %637 = sbr.rel (%p635) target = $region68
    $region67: #{tpu_custom_call.1} parent=5 // pred_region
      %s638 = ssub.s32 %s16, 2
      // Predicated region
      $region69: #{tpu_custom_call.1} parent=67 // pred_check
        %p639 = pneg %p265
      $region70: #{tpu_custom_call.1} parent=67 // pred_check_branch
        %641 = sbr.rel (%p639) target = $region72
      $region71: #{tpu_custom_call.1} parent=67 // pred_region
        %s642 = smul.u32 2, %s22
        %p643 = scmp.lt.s32.totalorder %s642, 3
        %s644 = scalar_select %p643, %s642, 3
        %s645 = smul.addr %s644, 8
        %s646 = scalar_lea.vmem %s10, %s645
      $region72: #{tpu_custom_call.1} parent=67 // pred_fallthru
        _
    $region68: #{tpu_custom_call.1} parent=5 // pred_fallthru
      _
  $region6: #{tpu_custom_call.1} parent=0 // loop_footer
    %s20 = sadd.s32 1, %s16
  $region7: #{tpu_custom_call.1} parent=0 // loop_footer_branch
    %15 = sbr.rel target = $region3
  $region8: #{tpu_custom_call.1} parent=0 // loop_exit
    _

</llo_original>
